<compile_context>
chip_gen: v5e
topology: v5e:2x2
jax: 0.10.0
libtpu: 0.0.40
codegen_flags: <defaults>
</compile_context>

<pallas_src>
import functools

import jax
import jax.numpy as jnp
from jax import lax
from jax.experimental import pallas as pl
from jax.experimental.pallas import tpu as pltpu

_MIB = 1024 * 1024


# ----------------------------------------------------------------------------
# Fused kernel: LeakyReLU -> Conv2d(4,2,1) -> ReLU -> ConvTranspose2d(4,2,1)
#               -> per-step BatchNorm partial sums.  `bt` batch samples / step.
# ----------------------------------------------------------------------------
def _fused_down_up_kernel(xs_ref, wd_ref, wu_ref, y_ref, st_ref, h1p_ref):
    # xs_ref : (bt, Ho+1, Wo+1, 4*Cin)  space-to-depth view of pad(x,1), channels-last, f32
    # wd_ref : (16*Cin, inner)          down-conv weight, K index = (a, b, p, q, c)
    # wu_ref : (4, 4*inner, outer)      up-conv weight, [phase, (a, b, ci), co]
    # y_ref  : (bt, Ho*Wo, 4*outer)     un-normalised up-conv output, phases packed on lanes
    # st_ref : (1, 2, outer)            per-step (sum, sum of squares) per channel, f32
    # h1p_ref: (bt, Ho+2, Wo+2, inner)  VMEM scratch: ReLU(down conv) with a 1-px zero halo
    bt, hp, wp, c4 = xs_ref.shape
    ho, wo = hp - 1, wp - 1
    inner = wd_ref.shape[-1]
    outer = wu_ref.shape[-1]
    cdt = wd_ref.dtype                      # MXU input dtype (f32 or bf16)
    m = bt * ho * wo

    # Zero the halo scratch only once; the interior is fully overwritten every step
    # and the 1-pixel border stays zero across grid iterations.
    @pl.when(pl.program_id(0) == 0)
    def _():
        h1p_ref[...] = jnp.zeros_like(h1p_ref)

    # LeakyReLU(0.2) applied once per element; single hoisted cast to the MXU dtype.
    xs = xs_ref[...]
    xs = jnp.where(xs >= 0, xs, 0.2 * xs).astype(cdt)

    # Down conv (4x4 / stride 2 / pad 1) as ONE matmul: K-concat of the four 2x2 shifts
    # of the space-to-depth view -> (m, 16*Cin) x (16*Cin, inner).
    lhs_d = jnp.concatenate(
        [xs[:, a:a + ho, b2:b2 + wo, :].reshape(m, c4)
         for a in (0, 1) for b2 in (0, 1)], axis=-1)
    h1 = jnp.dot(lhs_d, wd_ref[...], preferred_element_type=jnp.float32)
    h1 = jnp.maximum(h1, 0.0).astype(cdt)            # fused ReLU + one hoisted cast
    h1p_ref[:, 1:ho + 1, 1:wo + 1, :] = h1.reshape(bt, ho, wo, inner)
    h1p = h1p_ref[...]

    # ConvTranspose2d(4,2,1) via sub-pixel decomposition: one K-concat matmul per output
    # phase (K = 4*inner); all four phases packed on lanes, one full-width store.
    s = jnp.zeros((1, outer), jnp.float32)
    ss = jnp.zeros((1, outer), jnp.float32)
    phase_out = []
    ph = 0
    for di in (0, 1):
        for dj in (0, 1):
            lhs_u = jnp.concatenate(
                [h1p[:, di + a:di + a + ho, dj + b2:dj + b2 + wo, :].reshape(m, inner)
                 for a in (0, 1) for b2 in (0, 1)], axis=-1)
            acc = jnp.dot(lhs_u, wu_ref[ph], preferred_element_type=jnp.float32)
            s = s + jnp.sum(acc, axis=0, keepdims=True)
            ss = ss + jnp.sum(acc * acc, axis=0, keepdims=True)
            phase_out.append(acc)
            ph += 1
    y = jnp.concatenate(phase_out, axis=-1)           # (m, 4*outer) f32
    y_ref[...] = y.reshape(bt, ho * wo, 4 * outer).astype(y_ref.dtype)
    st_ref[0] = jnp.concatenate([s, ss], axis=0)      # (2, outer)


# ----------------------------------------------------------------------------
# VMEM budgeting / batch-tile selection helpers (all static Python at trace time)
# ----------------------------------------------------------------------------
def _vmem_capacity_bytes():
    try:
        info = pltpu.get_tpu_info()
        cap = getattr(info, "vmem_capacity_bytes", None)
        if cap:
            return int(cap)
    except Exception:
        pass
    return 64 * _MIB                                   # conservative: v7x per-core VMEM


def _per_sample_vmem_bytes(cin, inner, outer, ho, wo, bpe):
    f32 = 4
    m1 = ho * wo
    c4 = 4 * cin
    return int(
        2 * (ho + 1) * (wo + 1) * c4 * f32             # double-buffered xs block
        + (ho + 1) * (wo + 1) * c4 * (f32 + bpe)       # LeakyReLU value + cast
        + 2 * m1 * 4 * outer * bpe                     # double-buffered y block
        + (ho + 2) * (wo + 2) * inner * bpe            # halo scratch
        + m1 * 4 * c4 * bpe                            # K-concat down-conv LHS
        + m1 * inner * (f32 + bpe)                     # h1 accumulator + cast
        + m1 * 4 * inner * bpe                         # K-concat up-conv LHS
        + 5 * m1 * outer * f32                         # phase accumulators
        + m1 * 4 * outer * (f32 + bpe))                # packed y + cast


def _pick_batch_tile(n, m1, per_sample_bytes, budget_bytes, target_rows=256):
    divs = [d for d in range(1, n + 1) if n % d == 0]
    fit = [d for d in divs if d * per_sample_bytes <= budget_bytes] or [1]
    for d in fit:                      # smallest tile giving the MXU a healthy M dim
        if d * m1 >= target_rows:
            return d
    multi = [d for d in fit if n // d >= 2]            # else keep >=2 grid steps if possible
    return multi[-1] if multi else fit[-1]


# ----------------------------------------------------------------------------
# UNetSkipConnectionBlock (innermost) forward
# ----------------------------------------------------------------------------
@functools.partial(jax.jit, static_argnames=("eps", "compute_dtype"))
def unet_innermost_forward(x, w_down, w_up, *, eps=1e-5, compute_dtype=jnp.bfloat16):
    """x: (N, input_nc, H, W) NCHW f32 (H, W even);
    w_down: (inner_nc, input_nc, 4, 4) Conv2d OIHW, bias=False;
    w_up:   (inner_nc, outer_nc, 4, 4) ConvTranspose2d (in, out, kh, kw), bias=False.
    Returns (N, input_nc + outer_nc, H, W) float32."""
    n, cin, h, w = x.shape
    inner = w_down.shape[0]
    outer = w_up.shape[1]
    ho, wo = h // 2, w // 2
    m1 = ho * wo
    bpe = jnp.dtype(compute_dtype).itemsize

    # --- host-side layout only (~1x pass over x): channels-last space-to-depth of pad(x,1).
    xp = jnp.pad(x, ((0, 0), (0, 0), (1, 1), (1, 1))).transpose(0, 2, 3, 1)
    xs2d = (xp.reshape(n, ho + 1, 2, wo + 1, 2, cin)
              .transpose(0, 1, 3, 2, 4, 5)
              .reshape(n, ho + 1, wo + 1, 4 * cin))

    # --- weight repack (tiny; constant-folded under jit) ---
    # down conv: K index = (a, b, p, q, c) with kh = 2a+p, kw = 2b+q.
    wd = (w_down.reshape(inner, cin, 2, 2, 2, 2)       # (o, c, a, p, b, q)
                .transpose(2, 4, 3, 5, 1, 0)            # (a, b, p, q, c, o)
                .reshape(16 * cin, inner)
                .astype(compute_dtype))
    # transposed conv: phase (di,dj), shift (a,b) -> tap (3-di-2a, 3-dj-2b); K = (a,b,ci).
    wu = jnp.stack(
        [jnp.concatenate([w_up[:, :, 3 - di - 2 * a, 3 - dj - 2 * b]
                          for a in (0, 1) for b in (0, 1)], axis=0)
         for di in (0, 1) for dj in (0, 1)], axis=0).astype(compute_dtype)  # (4, 4*inner, outer)

    # --- VMEM budget (platform aware) + batch tile ---
    vmem_cap = _vmem_capacity_bytes()
    budget = (vmem_cap * 3) // 4                       # ~48 MiB on v7x, ~96 MiB on v5e/v6e
    weight_bytes = 2 * (wd.size + wu.size) * bpe
    per_sample = _per_sample_vmem_bytes(cin, inner, outer, ho, wo, bpe)
    bt = _pick_batch_tile(n, m1, per_sample, max(budget - weight_bytes, per_sample))
    nsteps = n // bt
    est_vmem = weight_bytes + bt * per_sample
    vmem_limit = None if est_vmem <= 24 * _MIB else int(
        min(max(est_vmem * 3 // 2, 32 * _MIB), budget))
    # TODO(synk): for very large H,W add a spatial (output-row) grid axis with a haloed
    # index_map so the per-step working set stays bounded on v7x (64 MiB VMEM per core).

    flops = 2 * n * m1 * (16 * cin) * inner + 2 * n * m1 * (16 * inner) * outer
    bytes_accessed = int(xs2d.size * 4 + (wd.size + wu.size) * bpe
                         + n * m1 * 4 * outer * bpe + nsteps * 2 * outer * 4)

    y_flat, stats = pl.pallas_call(
        _fused_down_up_kernel,
        grid=(nsteps,),
        in_specs=[
            pl.BlockSpec((bt, ho + 1, wo + 1, 4 * cin), lambda i: (i, 0, 0, 0)),
            pl.BlockSpec((16 * cin, inner), lambda i: (0, 0)),           # resident weights
            pl.BlockSpec((4, 4 * inner, outer), lambda i: (0, 0, 0)),    # resident weights
        ],
        out_specs=[
            pl.BlockSpec((bt, m1, 4 * outer), lambda i: (i, 0, 0)),
            pl.BlockSpec((1, 2, outer), lambda i: (i, 0, 0)),
        ],
        out_shape=[
            jax.ShapeDtypeStruct((n, m1, 4 * outer), compute_dtype),
            jax.ShapeDtypeStruct((nsteps, 2, outer), jnp.float32),
        ],
        scratch_shapes=[pltpu.VMEM((bt, ho + 2, wo + 2, inner), compute_dtype)],
        compiler_params=pltpu.CompilerParams(
            dimension_semantics=("parallel",),         # megacore / v7x: shard over TCs
            vmem_limit_bytes=vmem_limit),
        cost_estimate=pl.CostEstimate(flops=flops, transcendentals=0,
                                      bytes_accessed=bytes_accessed),
    )(xs2d, wd, wu)

    # --- BatchNorm2d (training-mode batch statistics) finalisation: (outer,)-sized math ---
    cnt = n * h * w
    mean = jnp.sum(stats[:, 0, :], axis=0) / cnt
    var = jnp.maximum(jnp.sum(stats[:, 1, :], axis=0) / cnt - mean * mean, 0.0)
    invstd = lax.rsqrt(var + eps)

    # --- tail: BN apply + phase unpack + NCHW + skip concat in ONE fused XLA pass ---
    y = y_flat.astype(jnp.float32).reshape(n, ho, wo, 2, 2, outer)
    y = (y - mean) * invstd
    y = y.transpose(0, 5, 1, 3, 2, 4).reshape(n, outer, h, w)
    return jnp.concatenate([x, y], axis=1)


# ----------------------------------------------------------------------------
# Pure-JAX reference (lax.conv) for the correctness check
# ----------------------------------------------------------------------------
def reference_forward(x, w_down, w_up, eps=1e-5):
    h = jnp.where(x >= 0, x, 0.2 * x)
    h = lax.conv_general_dilated(h, w_down, (2, 2), ((1, 1), (1, 1)),
                                 dimension_numbers=('NCHW', 'OIHW', 'NCHW'))
    h = jnp.maximum(h, 0.0)
    w_eq = jnp.flip(w_up, axis=(2, 3)).transpose(1, 0, 2, 3)
    y = lax.conv_general_dilated(h, w_eq, (1, 1), ((2, 2), (2, 2)),
                                 lhs_dilation=(2, 2),
                                 dimension_numbers=('NCHW', 'OIHW', 'NCHW'))
    mean = jnp.mean(y, axis=(0, 2, 3), keepdims=True)
    var = jnp.mean(jnp.square(y - mean), axis=(0, 2, 3), keepdims=True)
    y = (y - mean) * lax.rsqrt(var + eps)
    return jnp.concatenate([x, y], axis=1)


if __name__ == "__main__":
    key = jax.random.PRNGKey(0)
    k_x, k_wd, k_wu = jax.random.split(key, 3)

    N, outer_nc, inner_nc, H, W = 2, 4, 8, 16, 16
    x = jax.random.normal(k_x, (N, outer_nc, H, W), dtype=jnp.float32)
    # Conv2d weight (OIHW); ConvTranspose2d weight (in, out, kh, kw). bias=False.
    w_down = 0.05 * jax.random.normal(k_wd, (inner_nc, outer_nc, 4, 4), jnp.float32)
    w_up = 0.05 * jax.random.normal(k_wu, (inner_nc, outer_nc, 4, 4), jnp.float32)

    ref = jax.block_until_ready(reference_forward(x, w_down, w_up))

    # Exact-numerics path (f32 operands on the MXU): tight check vs. the reference.
    out_f32 = jax.block_until_ready(
        unet_innermost_forward(x, w_down, w_up, compute_dtype=jnp.float32))
    assert out_f32.shape == (N, 2 * outer_nc, H, W), out_f32.shape
    err_f32 = float(jnp.max(jnp.abs(out_f32 - ref)))
    assert err_f32 < 1e-4, err_f32

    # Default bf16 MXU path (v6e/v7x fast path; f32 accumulation + f32 BN stats):
    # loose check, error dominated by bf16 operand rounding of the normalised output.
    out_bf16 = jax.block_until_ready(unet_innermost_forward(x, w_down, w_up))
    err_bf16 = float(jnp.max(jnp.abs(out_bf16 - ref)))
    assert out_bf16.shape == (N, 2 * outer_nc, H, W) and err_bf16 < 0.25, err_bf16

    # TODO(synk): outermost / middle configs need a `submodule` instance
    # (Upsample+Conv stack); only the self-contained innermost block is implemented.
    print("KERNEL_OK")
</pallas_src>

<mosaic_0001>
module attributes {stable_mosaic.version = 11 : i64} {
  func.func @_fused_down_up_kernel(%arg0: i32, %arg1: memref<1x9x9x16xf32, #tpu.memory_space<vmem>>, %arg2: memref<64x8xf32, #tpu.memory_space<vmem>>, %arg3: memref<4x32x4xf32, #tpu.memory_space<vmem>>, %arg4: memref<1x64x16xf32, #tpu.memory_space<vmem>>, %arg5: memref<1x2x4xf32, #tpu.memory_space<vmem>>, %arg6: memref<1x10x10x8xf32, #tpu.memory_space<vmem>>) attributes {dimension_semantics = [#tpu.dimension_semantics<parallel>], iteration_bounds = array<i64: 2>, scalar_prefetch = 0 : i64, scratch_operands = 1 : i64, tpu.core_type = #tpu.core_type<tc>, window_params = [{transform_indices = @transform_0, window_bounds = array<i64: 1, 9, 9, 16>}, {pipeline_mode = #tpu.pipeline_mode<synchronous>, transform_indices = @transform_1, window_bounds = array<i64: 64, 8>}, {pipeline_mode = #tpu.pipeline_mode<synchronous>, transform_indices = @transform_2, window_bounds = array<i64: 4, 32, 4>}, {transform_indices = @transform_3, window_bounds = array<i64: 1, 64, 16>}, {transform_indices = @transform_4, window_bounds = array<i64: 1, 2, 4>}]} {
    %c0_i32 = arith.constant 0 : i32
    %0 = arith.cmpi eq, %arg0, %c0_i32 : i32
    %1 = arith.extui %0 : i1 to i32
    %c0_i32_0 = arith.constant 0 : i32
    %2 = arith.cmpi ne, %1, %c0_i32_0 : i32
    scf.if %2 {
      %cst_46 = arith.constant 0.000000e+00 : f32
      %110 = vector.broadcast %cst_46 : f32 to vector<1x10x10x8xf32>
      %c0_47 = arith.constant 0 : index
      %c0_48 = arith.constant 0 : index
      %c0_49 = arith.constant 0 : index
      %c0_50 = arith.constant 0 : index
      %111 = vector.load %arg6[%c0_47, %c0_48, %c0_49, %c0_50] : memref<1x10x10x8xf32, #tpu.memory_space<vmem>>, vector<1x10x10x8xf32>
      tpu.vector_store %arg6[%c0_47, %c0_48, %c0_49, %c0_50], %110 {strides = array<i32>} : memref<1x10x10x8xf32, #tpu.memory_space<vmem>>, vector<1x10x10x8xf32>,
    } else {
    }
    %c0 = arith.constant 0 : index
    %c0_1 = arith.constant 0 : index
    %c0_2 = arith.constant 0 : index
    %c0_3 = arith.constant 0 : index
    %3 = vector.load %arg1[%c0, %c0_1, %c0_2, %c0_3] : memref<1x9x9x16xf32, #tpu.memory_space<vmem>>, vector<1x9x9x16xf32>
    %cst = arith.constant 0.000000e+00 : f32
    %4 = vector.broadcast %cst : f32 to vector<1x9x9x16xf32>
    %5 = arith.cmpf oge, %3, %4 : vector<1x9x9x16xf32>
    %cst_4 = arith.constant 2.000000e-01 : f32
    %6 = vector.broadcast %cst_4 : f32 to vector<1x9x9x16xf32>
    %7 = arith.mulf %6, %3 : vector<1x9x9x16xf32>
    %8 = arith.select %5, %3, %7 : vector<1x9x9x16xi1>, vector<1x9x9x16xf32>
    %9 = vector.extract_strided_slice %8 {offsets = [0, 0, 0, 0], sizes = [1, 8, 8, 16], strides = [1, 1, 1, 1]} : vector<1x9x9x16xf32> to vector<1x8x8x16xf32>
    %10 = vector.shape_cast %9 : vector<1x8x8x16xf32> to vector<64x16xf32>
    %11 = vector.extract_strided_slice %8 {offsets = [0, 0, 1, 0], sizes = [1, 8, 8, 16], strides = [1, 1, 1, 1]} : vector<1x9x9x16xf32> to vector<1x8x8x16xf32>
    %12 = vector.shape_cast %11 : vector<1x8x8x16xf32> to vector<64x16xf32>
    %13 = vector.extract_strided_slice %8 {offsets = [0, 1, 0, 0], sizes = [1, 8, 8, 16], strides = [1, 1, 1, 1]} : vector<1x9x9x16xf32> to vector<1x8x8x16xf32>
    %14 = vector.shape_cast %13 : vector<1x8x8x16xf32> to vector<64x16xf32>
    %15 = vector.extract_strided_slice %8 {offsets = [0, 1, 1, 0], sizes = [1, 8, 8, 16], strides = [1, 1, 1, 1]} : vector<1x9x9x16xf32> to vector<1x8x8x16xf32>
    %16 = vector.shape_cast %15 : vector<1x8x8x16xf32> to vector<64x16xf32>
    %17 = tpu.concatenate %10, %12, %14, %16 in 1 : vector<64x16xf32>, vector<64x16xf32>, vector<64x16xf32>, vector<64x16xf32> -> vector<64x64xf32>
    %c0_5 = arith.constant 0 : index
    %c0_6 = arith.constant 0 : index
    %18 = vector.load %arg2[%c0_5, %c0_6] : memref<64x8xf32, #tpu.memory_space<vmem>>, vector<64x8xf32>
    %cst_7 = arith.constant dense<0.000000e+00> : vector<64x8xf32>
    %19 = tpu.matmul %17, %18, %cst_7 {dimension_numbers = #tpu.dot_dimension_numbers<[1], [0], [0], [1], [0, 0, 1, 1], [], []>} : vector<64x64xf32>, vector<64x8xf32>, vector<64x8xf32> -> vector<64x8xf32>
    %cst_8 = arith.constant 0.000000e+00 : f32
    %20 = vector.broadcast %cst_8 : f32 to vector<64x8xf32>
    %21 = arith.maximumf %19, %20 : vector<64x8xf32>
    %22 = vector.shape_cast %21 : vector<64x8xf32> to vector<1x8x8x8xf32>
    %c0_9 = arith.constant 0 : index
    %c1 = arith.constant 1 : index
    %c1_10 = arith.constant 1 : index
    %c0_11 = arith.constant 0 : index
    %23 = vector.load %arg6[%c0_9, %c1, %c1_10, %c0_11] : memref<1x10x10x8xf32, #tpu.memory_space<vmem>>, vector<1x8x8x8xf32>
    tpu.vector_store %arg6[%c0_9, %c1, %c1_10, %c0_11], %22 {strides = array<i32>} : memref<1x10x10x8xf32, #tpu.memory_space<vmem>>, vector<1x8x8x8xf32>,
    %c0_12 = arith.constant 0 : index
    %c0_13 = arith.constant 0 : index
    %c0_14 = arith.constant 0 : index
    %c0_15 = arith.constant 0 : index
    %24 = vector.load %arg6[%c0_12, %c0_13, %c0_14, %c0_15] : memref<1x10x10x8xf32, #tpu.memory_space<vmem>>, vector<1x10x10x8xf32>
    %cst_16 = arith.constant 0.000000e+00 : f32
    %25 = vector.broadcast %cst_16 : f32 to vector<1x4xf32>
    %cst_17 = arith.constant 0.000000e+00 : f32
    %26 = vector.broadcast %cst_17 : f32 to vector<1x4xf32>
    %27 = vector.extract_strided_slice %24 {offsets = [0, 0, 0, 0], sizes = [1, 8, 8, 8], strides = [1, 1, 1, 1]} : vector<1x10x10x8xf32> to vector<1x8x8x8xf32>
    %28 = vector.shape_cast %27 : vector<1x8x8x8xf32> to vector<64x8xf32>
    %29 = vector.extract_strided_slice %24 {offsets = [0, 0, 1, 0], sizes = [1, 8, 8, 8], strides = [1, 1, 1, 1]} : vector<1x10x10x8xf32> to vector<1x8x8x8xf32>
    %30 = vector.shape_cast %29 : vector<1x8x8x8xf32> to vector<64x8xf32>
    %31 = vector.extract_strided_slice %24 {offsets = [0, 1, 0, 0], sizes = [1, 8, 8, 8], strides = [1, 1, 1, 1]} : vector<1x10x10x8xf32> to vector<1x8x8x8xf32>
    %32 = vector.shape_cast %31 : vector<1x8x8x8xf32> to vector<64x8xf32>
    %33 = vector.extract_strided_slice %24 {offsets = [0, 1, 1, 0], sizes = [1, 8, 8, 8], strides = [1, 1, 1, 1]} : vector<1x10x10x8xf32> to vector<1x8x8x8xf32>
    %34 = vector.shape_cast %33 : vector<1x8x8x8xf32> to vector<64x8xf32>
    %35 = tpu.concatenate %28, %30, %32, %34 in 1 : vector<64x8xf32>, vector<64x8xf32>, vector<64x8xf32>, vector<64x8xf32> -> vector<64x32xf32>
    %c0_18 = arith.constant 0 : index
    %c0_19 = arith.constant 0 : index
    %c0_20 = arith.constant 0 : index
    %36 = vector.load %arg3[%c0_18, %c0_19, %c0_20] : memref<4x32x4xf32, #tpu.memory_space<vmem>>, vector<1x32x4xf32>
    %37 = vector.shape_cast %36 : vector<1x32x4xf32> to vector<32x4xf32>
    %cst_21 = arith.constant dense<0.000000e+00> : vector<64x4xf32>
    %38 = tpu.matmul %35, %37, %cst_21 {dimension_numbers = #tpu.dot_dimension_numbers<[1], [0], [0], [1], [0, 0, 1, 1], [], []>} : vector<64x32xf32>, vector<32x4xf32>, vector<64x4xf32> -> vector<64x4xf32>
    %cst_22 = arith.constant dense<0.000000e+00> : vector<4xf32>
    %39 = vector.multi_reduction <add>, %38, %cst_22 [0] : vector<64x4xf32> to vector<4xf32>
    %40 = vector.shape_cast %39 : vector<4xf32> to vector<1x4xf32>
    %41 = arith.addf %25, %40 : vector<1x4xf32>
    %42 = arith.mulf %38, %38 : vector<64x4xf32>
    %cst_23 = arith.constant dense<0.000000e+00> : vector<4xf32>
    %43 = vector.multi_reduction <add>, %42, %cst_23 [0] : vector<64x4xf32> to vector<4xf32>
    %44 = vector.shape_cast %43 : vector<4xf32> to vector<1x4xf32>
    %45 = arith.addf %26, %44 : vector<1x4xf32>
    %46 = vector.extract_strided_slice %24 {offsets = [0, 0, 1, 0], sizes = [1, 8, 8, 8], strides = [1, 1, 1, 1]} : vector<1x10x10x8xf32> to vector<1x8x8x8xf32>
    %47 = vector.shape_cast %46 : vector<1x8x8x8xf32> to vector<64x8xf32>
    %48 = vector.extract_strided_slice %24 {offsets = [0, 0, 2, 0], sizes = [1, 8, 8, 8], strides = [1, 1, 1, 1]} : vector<1x10x10x8xf32> to vector<1x8x8x8xf32>
    %49 = vector.shape_cast %48 : vector<1x8x8x8xf32> to vector<64x8xf32>
    %50 = vector.extract_strided_slice %24 {offsets = [0, 1, 1, 0], sizes = [1, 8, 8, 8], strides = [1, 1, 1, 1]} : vector<1x10x10x8xf32> to vector<1x8x8x8xf32>
    %51 = vector.shape_cast %50 : vector<1x8x8x8xf32> to vector<64x8xf32>
    %52 = vector.extract_strided_slice %24 {offsets = [0, 1, 2, 0], sizes = [1, 8, 8, 8], strides = [1, 1, 1, 1]} : vector<1x10x10x8xf32> to vector<1x8x8x8xf32>
    %53 = vector.shape_cast %52 : vector<1x8x8x8xf32> to vector<64x8xf32>
    %54 = tpu.concatenate %47, %49, %51, %53 in 1 : vector<64x8xf32>, vector<64x8xf32>, vector<64x8xf32>, vector<64x8xf32> -> vector<64x32xf32>
    %c1_24 = arith.constant 1 : index
    %c0_25 = arith.constant 0 : index
    %c0_26 = arith.constant 0 : index
    %55 = vector.load %arg3[%c1_24, %c0_25, %c0_26] : memref<4x32x4xf32, #tpu.memory_space<vmem>>, vector<1x32x4xf32>
    %56 = vector.shape_cast %55 : vector<1x32x4xf32> to vector<32x4xf32>
    %cst_27 = arith.constant dense<0.000000e+00> : vector<64x4xf32>
    %57 = tpu.matmul %54, %56, %cst_27 {dimension_numbers = #tpu.dot_dimension_numbers<[1], [0], [0], [1], [0, 0, 1, 1], [], []>} : vector<64x32xf32>, vector<32x4xf32>, vector<64x4xf32> -> vector<64x4xf32>
    %cst_28 = arith.constant dense<0.000000e+00> : vector<4xf32>
    %58 = vector.multi_reduction <add>, %57, %cst_28 [0] : vector<64x4xf32> to vector<4xf32>
    %59 = vector.shape_cast %58 : vector<4xf32> to vector<1x4xf32>
    %60 = arith.addf %41, %59 : vector<1x4xf32>
    %61 = arith.mulf %57, %57 : vector<64x4xf32>
    %cst_29 = arith.constant dense<0.000000e+00> : vector<4xf32>
    %62 = vector.multi_reduction <add>, %61, %cst_29 [0] : vector<64x4xf32> to vector<4xf32>
    %63 = vector.shape_cast %62 : vector<4xf32> to vector<1x4xf32>
    %64 = arith.addf %45, %63 : vector<1x4xf32>
    %65 = vector.extract_strided_slice %24 {offsets = [0, 1, 0, 0], sizes = [1, 8, 8, 8], strides = [1, 1, 1, 1]} : vector<1x10x10x8xf32> to vector<1x8x8x8xf32>
    %66 = vector.shape_cast %65 : vector<1x8x8x8xf32> to vector<64x8xf32>
    %67 = vector.extract_strided_slice %24 {offsets = [0, 1, 1, 0], sizes = [1, 8, 8, 8], strides = [1, 1, 1, 1]} : vector<1x10x10x8xf32> to vector<1x8x8x8xf32>
    %68 = vector.shape_cast %67 : vector<1x8x8x8xf32> to vector<64x8xf32>
    %69 = vector.extract_strided_slice %24 {offsets = [0, 2, 0, 0], sizes = [1, 8, 8, 8], strides = [1, 1, 1, 1]} : vector<1x10x10x8xf32> to vector<1x8x8x8xf32>
    %70 = vector.shape_cast %69 : vector<1x8x8x8xf32> to vector<64x8xf32>
    %71 = vector.extract_strided_slice %24 {offsets = [0, 2, 1, 0], sizes = [1, 8, 8, 8], strides = [1, 1, 1, 1]} : vector<1x10x10x8xf32> to vector<1x8x8x8xf32>
    %72 = vector.shape_cast %71 : vector<1x8x8x8xf32> to vector<64x8xf32>
    %73 = tpu.concatenate %66, %68, %70, %72 in 1 : vector<64x8xf32>, vector<64x8xf32>, vector<64x8xf32>, vector<64x8xf32> -> vector<64x32xf32>
    %c2 = arith.constant 2 : index
    %c0_30 = arith.constant 0 : index
    %c0_31 = arith.constant 0 : index
    %74 = vector.load %arg3[%c2, %c0_30, %c0_31] : memref<4x32x4xf32, #tpu.memory_space<vmem>>, vector<1x32x4xf32>
    %75 = vector.shape_cast %74 : vector<1x32x4xf32> to vector<32x4xf32>
    %cst_32 = arith.constant dense<0.000000e+00> : vector<64x4xf32>
    %76 = tpu.matmul %73, %75, %cst_32 {dimension_numbers = #tpu.dot_dimension_numbers<[1], [0], [0], [1], [0, 0, 1, 1], [], []>} : vector<64x32xf32>, vector<32x4xf32>, vector<64x4xf32> -> vector<64x4xf32>
    %cst_33 = arith.constant dense<0.000000e+00> : vector<4xf32>
    %77 = vector.multi_reduction <add>, %76, %cst_33 [0] : vector<64x4xf32> to vector<4xf32>
    %78 = vector.shape_cast %77 : vector<4xf32> to vector<1x4xf32>
    %79 = arith.addf %60, %78 : vector<1x4xf32>
    %80 = arith.mulf %76, %76 : vector<64x4xf32>
    %cst_34 = arith.constant dense<0.000000e+00> : vector<4xf32>
    %81 = vector.multi_reduction <add>, %80, %cst_34 [0] : vector<64x4xf32> to vector<4xf32>
    %82 = vector.shape_cast %81 : vector<4xf32> to vector<1x4xf32>
    %83 = arith.addf %64, %82 : vector<1x4xf32>
    %84 = vector.extract_strided_slice %24 {offsets = [0, 1, 1, 0], sizes = [1, 8, 8, 8], strides = [1, 1, 1, 1]} : vector<1x10x10x8xf32> to vector<1x8x8x8xf32>
    %85 = vector.shape_cast %84 : vector<1x8x8x8xf32> to vector<64x8xf32>
    %86 = vector.extract_strided_slice %24 {offsets = [0, 1, 2, 0], sizes = [1, 8, 8, 8], strides = [1, 1, 1, 1]} : vector<1x10x10x8xf32> to vector<1x8x8x8xf32>
    %87 = vector.shape_cast %86 : vector<1x8x8x8xf32> to vector<64x8xf32>
    %88 = vector.extract_strided_slice %24 {offsets = [0, 2, 1, 0], sizes = [1, 8, 8, 8], strides = [1, 1, 1, 1]} : vector<1x10x10x8xf32> to vector<1x8x8x8xf32>
    %89 = vector.shape_cast %88 : vector<1x8x8x8xf32> to vector<64x8xf32>
    %90 = vector.extract_strided_slice %24 {offsets = [0, 2, 2, 0], sizes = [1, 8, 8, 8], strides = [1, 1, 1, 1]} : vector<1x10x10x8xf32> to vector<1x8x8x8xf32>
    %91 = vector.shape_cast %90 : vector<1x8x8x8xf32> to vector<64x8xf32>
    %92 = tpu.concatenate %85, %87, %89, %91 in 1 : vector<64x8xf32>, vector<64x8xf32>, vector<64x8xf32>, vector<64x8xf32> -> vector<64x32xf32>
    %c3 = arith.constant 3 : index
    %c0_35 = arith.constant 0 : index
    %c0_36 = arith.constant 0 : index
    %93 = vector.load %arg3[%c3, %c0_35, %c0_36] : memref<4x32x4xf32, #tpu.memory_space<vmem>>, vector<1x32x4xf32>
    %94 = vector.shape_cast %93 : vector<1x32x4xf32> to vector<32x4xf32>
    %cst_37 = arith.constant dense<0.000000e+00> : vector<64x4xf32>
    %95 = tpu.matmul %92, %94, %cst_37 {dimension_numbers = #tpu.dot_dimension_numbers<[1], [0], [0], [1], [0, 0, 1, 1], [], []>} : vector<64x32xf32>, vector<32x4xf32>, vector<64x4xf32> -> vector<64x4xf32>
    %cst_38 = arith.constant dense<0.000000e+00> : vector<4xf32>
    %96 = vector.multi_reduction <add>, %95, %cst_38 [0] : vector<64x4xf32> to vector<4xf32>
    %97 = vector.shape_cast %96 : vector<4xf32> to vector<1x4xf32>
    %98 = arith.addf %79, %97 : vector<1x4xf32>
    %99 = arith.mulf %95, %95 : vector<64x4xf32>
    %cst_39 = arith.constant dense<0.000000e+00> : vector<4xf32>
    %100 = vector.multi_reduction <add>, %99, %cst_39 [0] : vector<64x4xf32> to vector<4xf32>
    %101 = vector.shape_cast %100 : vector<4xf32> to vector<1x4xf32>
    %102 = arith.addf %83, %101 : vector<1x4xf32>
    %103 = tpu.concatenate %38, %57, %76, %95 in 1 : vector<64x4xf32>, vector<64x4xf32>, vector<64x4xf32>, vector<64x4xf32> -> vector<64x16xf32>
    %104 = vector.shape_cast %103 : vector<64x16xf32> to vector<1x64x16xf32>
    %c0_40 = arith.constant 0 : index
    %c0_41 = arith.constant 0 : index
    %c0_42 = arith.constant 0 : index
    %105 = vector.load %arg4[%c0_40, %c0_41, %c0_42] : memref<1x64x16xf32, #tpu.memory_space<vmem>>, vector<1x64x16xf32>
    tpu.vector_store %arg4[%c0_40, %c0_41, %c0_42], %104 {strides = array<i32>} : memref<1x64x16xf32, #tpu.memory_space<vmem>>, vector<1x64x16xf32>,
    %106 = tpu.concatenate %98, %102 in 0 : vector<1x4xf32>, vector<1x4xf32> -> vector<2x4xf32>
    %c0_43 = arith.constant 0 : index
    %c0_44 = arith.constant 0 : index
    %c0_45 = arith.constant 0 : index
    %107 = vector.load %arg5[%c0_43, %c0_44, %c0_45] : memref<1x2x4xf32, #tpu.memory_space<vmem>>, vector<1x2x4xf32>
    %108 = vector.shape_cast %107 : vector<1x2x4xf32> to vector<2x4xf32>
    %109 = vector.shape_cast %106 : vector<2x4xf32> to vector<1x2x4xf32>
    tpu.vector_store %arg5[%c0_43, %c0_44, %c0_45], %109 {strides = array<i32>} : memref<1x2x4xf32, #tpu.memory_space<vmem>>, vector<1x2x4xf32>,
    return
  }
  func.func @transform_0(%arg0: i32) -> (i32, i32, i32, i32) {
    %c0_i32 = arith.constant 0 : i32
    %c0_i32_0 = arith.constant 0 : i32
    %c0_i32_1 = arith.constant 0 : i32
    %c0_i32_2 = arith.constant 0 : i32
    return %arg0, %c0_i32, %c0_i32_0, %c0_i32_1 : i32, i32, i32, i32
  }
  func.func @transform_1(%arg0: i32) -> (i32, i32) {
    %c0_i32 = arith.constant 0 : i32
    %c0_i32_0 = arith.constant 0 : i32
    %c0_i32_1 = arith.constant 0 : i32
    return %c0_i32, %c0_i32_0 : i32, i32
  }
  func.func @transform_2(%arg0: i32) -> (i32, i32, i32) {
    %c0_i32 = arith.constant 0 : i32
    %c0_i32_0 = arith.constant 0 : i32
    %c0_i32_1 = arith.constant 0 : i32
    %c0_i32_2 = arith.constant 0 : i32
    return %c0_i32, %c0_i32_0, %c0_i32_1 : i32, i32, i32
  }
  func.func @transform_3(%arg0: i32) -> (i32, i32, i32) {
    %c0_i32 = arith.constant 0 : i32
    %c0_i32_0 = arith.constant 0 : i32
    %c0_i32_1 = arith.constant 0 : i32
    return %arg0, %c0_i32, %c0_i32_0 : i32, i32, i32
  }
  func.func @transform_4(%arg0: i32) -> (i32, i32, i32) {
    %c0_i32 = arith.constant 0 : i32
    %c0_i32_0 = arith.constant 0 : i32
    %c0_i32_1 = arith.constant 0 : i32
    return %arg0, %c0_i32, %c0_i32_0 : i32, i32, i32
  }
}

</mosaic_0001>

<llo_original>
// kernel: unet_innermost_forward.1
$region0: #{unet_innermost_forward.1}
  #allocation0 [shape = 'u32[]', space=smem, size = 0x4, offset = 0x4, fixed_abs, tag = 'smem constant byte address 0x4 - core index']
  #allocation1 [shape = 'u32[72,128]{1,0:T(1,128)}', space=vmem, size = 0x9000, scoped, tag = 'internal scratch']
  #allocation2 [shape = 'f32[1,10,10,8]{3,2,1,0:T(8,128)}', space=vmem, size = 0x14000, scoped, tag = 'scratch operand']
  %s0 = inlined_call_operand.vmem [shape: f32[2,9,9,16], index: 0, kind: input, shape index: {}]
  %s1 = inlined_call_operand.vmem [shape: f32[64,8], index: 1, kind: input, shape index: {}]
  %s2 = inlined_call_operand.vmem [shape: f32[4,32,4], index: 2, kind: input, shape index: {}]
  %s3 = inlined_call_operand.vmem [shape: f32[2,64,16], index: 3, kind: output, shape index: {0}]
  %s4 = inlined_call_operand.vmem [shape: f32[2,2,4], index: 4, kind: output, shape index: {1}]
  %5 = xla_tuple %s3, %s4
  %s6 = sld [smem:[#allocation0]]
  $region57: #{unet_innermost_forward.1} parent=0
    _
  %s8 = ssub.s32 1, %s6
  %s9 = scalar_select 0, %s8, %s6
  loop: start=0, step=1, limit=4
  $region2: #{unet_innermost_forward.1} parent=0 // loop_pre_header
    _
  $region3: #{unet_innermost_forward.1} parent=0 // loop_header
    %s11 = sphi 0, %s15
    %p12 = scmp.ge.s32.totalorder %s11, 4
    %s21 = sphi 0, %s23
    %s24 = sphi 0, %s21
    %s25 = sphi 0, %s24
    %s41 = sphi 0, %s25
    %s45 = sphi 0, %s45
    %s47 = sphi 0, %s45
    %s48 = sphi 0, %s47
    %s62 = sphi 0, %s48
    %s66 = sphi 0, %s66
    %s68 = sphi 0, %s66
    %s69 = sphi 0, %s68
    %s83 = sphi 0, %s69
    %s89 = sphi 0, %s91
    %s92 = sphi 0, %s89
    %s93 = sphi 0, %s92
    %s109 = sphi 0, %s93
    %s115 = sphi 0, %s117
    %s118 = sphi 0, %s115
    %s119 = sphi 0, %s118
    %s135 = sphi 0, %s119
  $region4: #{unet_innermost_forward.1} parent=0 // loop_header_branch
    %14 = sbr.rel (%p12) target = $region8
  $region5: #{unet_innermost_forward.1} parent=0 // loop_body
    %s16 = ssub.s32 %s11, 1
    %s17 = ssub.s32 %s11, 2
    %s18 = sadd.s32 %s11, 1
    %s19 = ssub.s32 %s11, %s18
    %p20 = scmp.eq.s32.totalorder %s19, 0
    %s22 = sadd.s32 %s21, 1
    %s23 = scalar_select %p20, %s21, %s22
    %p26 = pneg %p20
    %p27 = scmp.eq.s32.totalorder %s11, 1
    %p28 = por %p26, %p27
    %p29 = scmp.ne.s32.totalorder %s21, %s24
    %p30 = scmp.eq.s32.totalorder %s11, 0
    %p31 = por %p29, %p30
    %p32 = scmp.ne.s32.totalorder %s21, %s24
    %p33 = scmp.eq.s32.totalorder %s16, 1
    %p34 = por %p32, %p33
    %p35 = scmp.ne.s32.totalorder %s24, %s25
    %p36 = scmp.eq.s32.totalorder %s16, 0
    %p37 = por %p35, %p36
    %p38 = scmp.ne.s32.totalorder %s24, %s25
    %p39 = scmp.eq.s32.totalorder %s17, 1
    %p40 = por %p38, %p39
    %p42 = scmp.ne.s32.totalorder %s25, %s41
    %p43 = scmp.eq.s32.totalorder %s17, 0
    %p44 = por %p42, %p43
    %s46 = sadd.s32 %s45, 1
    %p49 = scmp.eq.s32.totalorder %s11, 1
    %p50 = scmp.ne.s32.totalorder %s45, %s47
    %p51 = scmp.eq.s32.totalorder %s11, 0
    %p52 = por %p50, %p51
    %p53 = scmp.ne.s32.totalorder %s45, %s47
    %p54 = scmp.eq.s32.totalorder %s16, 1
    %p55 = por %p53, %p54
    %p56 = scmp.ne.s32.totalorder %s47, %s48
    %p57 = scmp.eq.s32.totalorder %s16, 0
    %p58 = por %p56, %p57
    %p59 = scmp.ne.s32.totalorder %s47, %s48
    %p60 = scmp.eq.s32.totalorder %s17, 1
    %p61 = por %p59, %p60
    %p63 = scmp.ne.s32.totalorder %s48, %s62
    %p64 = scmp.eq.s32.totalorder %s17, 0
    %p65 = por %p63, %p64
    %s67 = sadd.s32 %s66, 1
    %p70 = scmp.eq.s32.totalorder %s11, 1
    %p71 = scmp.ne.s32.totalorder %s66, %s68
    %p72 = scmp.eq.s32.totalorder %s11, 0
    %p73 = por %p71, %p72
    %p74 = scmp.ne.s32.totalorder %s66, %s68
    %p75 = scmp.eq.s32.totalorder %s16, 1
    %p76 = por %p74, %p75
    %p77 = scmp.ne.s32.totalorder %s68, %s69
    %p78 = scmp.eq.s32.totalorder %s16, 0
    %p79 = por %p77, %p78
    %p80 = scmp.ne.s32.totalorder %s68, %s69
    %p81 = scmp.eq.s32.totalorder %s17, 1
    %p82 = por %p80, %p81
    %p84 = scmp.ne.s32.totalorder %s69, %s83
    %p85 = scmp.eq.s32.totalorder %s17, 0
    %p86 = por %p84, %p85
    %s87 = ssub.s32 %s11, %s18
    %p88 = scmp.eq.s32.totalorder %s87, 0
    %s90 = sadd.s32 %s89, 1
    %s91 = scalar_select %p88, %s89, %s90
    %p94 = pneg %p88
    %p95 = scmp.eq.s32.totalorder %s11, 1
    %p96 = por %p94, %p95
    %p97 = scmp.ne.s32.totalorder %s89, %s92
    %p98 = scmp.eq.s32.totalorder %s11, 0
    %p99 = por %p97, %p98
    %p100 = scmp.ne.s32.totalorder %s89, %s92
    %p101 = scmp.eq.s32.totalorder %s16, 1
    %p102 = por %p100, %p101
    %p103 = scmp.ne.s32.totalorder %s92, %s93
    %p104 = scmp.eq.s32.totalorder %s16, 0
    %p105 = por %p103, %p104
    %p106 = scmp.ne.s32.totalorder %s92, %s93
    %p107 = scmp.eq.s32.totalorder %s17, 1
    %p108 = por %p106, %p107
    %p110 = scmp.ne.s32.totalorder %s93, %s109
    %p111 = scmp.eq.s32.totalorder %s17, 0
    %p112 = por %p110, %p111
    %s113 = ssub.s32 %s11, %s18
    %p114 = scmp.eq.s32.totalorder %s113, 0
    %s116 = sadd.s32 %s115, 1
    %s117 = scalar_select %p114, %s115, %s116
    %p120 = pneg %p114
    %p121 = scmp.eq.s32.totalorder %s11, 1
    %p122 = por %p120, %p121
    %p123 = scmp.ne.s32.totalorder %s115, %s118
    %p124 = scmp.eq.s32.totalorder %s11, 0
    %p125 = por %p123, %p124
    %p126 = scmp.ne.s32.totalorder %s115, %s118
    %p127 = scmp.eq.s32.totalorder %s16, 1
    %p128 = por %p126, %p127
    %p129 = scmp.ne.s32.totalorder %s118, %s119
    %p130 = scmp.eq.s32.totalorder %s16, 0
    %p131 = por %p129, %p130
    %p132 = scmp.ne.s32.totalorder %s118, %s119
    %p133 = scmp.eq.s32.totalorder %s17, 1
    %p134 = por %p132, %p133
    %p136 = scmp.ne.s32.totalorder %s119, %s135
    %p137 = scmp.eq.s32.totalorder %s17, 0
    %p138 = por %p136, %p137
    %p139 = scmp.le.s32.totalorder 1, %s11
    %p140 = scmp.lt.s32.totalorder %s11, 3
    %p141 = pnand %p139, %p140
    %p142 = pneg %p141
    // Predicated region
    $region9: #{unet_innermost_forward.1} parent=5 // pred_check
      _
    $region10: #{unet_innermost_forward.1} parent=5 // pred_check_branch
      %144 = sbr.rel (%p141) target = $region12
    $region11: #{unet_innermost_forward.1} parent=5 // pred_region
      %s145 = ssub.s32 %s11, 1
      // Predicated region
      $region13: #{unet_innermost_forward.1} parent=11 // pred_check
        %p146 = pneg %p58
      $region14: #{unet_innermost_forward.1} parent=11 // pred_check_branch
        %148 = sbr.rel (%p146) target = $region16
      $region15: #{unet_innermost_forward.1} parent=11 // pred_region
        _
      $region16: #{unet_innermost_forward.1} parent=11 // pred_fallthru
        _
      // Predicated region
      $region17: #{unet_innermost_forward.1} parent=11 // pred_check
        %p149 = pneg %p79
      $region18: #{unet_innermost_forward.1} parent=11 // pred_check_branch
        %151 = sbr.rel (%p149) target = $region20
      $region19: #{unet_innermost_forward.1} parent=11 // pred_region
        _
      $region20: #{unet_innermost_forward.1} parent=11 // pred_fallthru
        _
    $region12: #{unet_innermost_forward.1} parent=5 // pred_fallthru
      _
    %p152 = scmp.lt.s32.totalorder %s11, 2
    // Predicated region
    $region21: #{unet_innermost_forward.1} parent=5 // pred_check
      %p153 = pneg %p152
    $region22: #{unet_innermost_forward.1} parent=5 // pred_check_branch
      %155 = sbr.rel (%p153) target = $region24
    $region23: #{unet_innermost_forward.1} parent=5 // pred_region
      // Predicated region
      $region25: #{unet_innermost_forward.1} parent=23 // pred_check
        %p156 = pneg %p31
      $region26: #{unet_innermost_forward.1} parent=23 // pred_check_branch
        %158 = sbr.rel (%p156) target = $region28
      $region27: #{unet_innermost_forward.1} parent=23 // pred_region
        %p159 = scmp.lt.s32.totalorder %s11, 1
        %s160 = scalar_select %p159, %s11, 1
        %s161 = smul.addr %s160, 18
        %s162 = smul.addr %s161, 8
        %s163 = scalar_lea.vmem %s0, %s162
      $region28: #{unet_innermost_forward.1} parent=23 // pred_fallthru
        _
    $region24: #{unet_innermost_forward.1} parent=5 // pred_fallthru
      _
    %p164 = scmp.le.s32.totalorder 1, %s11
    %p165 = scmp.lt.s32.totalorder %s11, 3
    %p166 = pnand %p164, %p165
    %p167 = pneg %p166
    // Predicated region
    $region29: #{unet_innermost_forward.1} parent=5 // pred_check
      _
    $region30: #{unet_innermost_forward.1} parent=5 // pred_check_branch
      %169 = sbr.rel (%p166) target = $region32
    $region31: #{unet_innermost_forward.1} parent=5 // pred_region
      %s170 = ssub.s32 %s11, 1
      %p171 = scmp.lt.s32.totalorder %s16, 1
      %s172 = scalar_select %p171, %s16, 1
      %s173 = smul.addr %s172, 18
      %s174 = smul.addr %s173, 8
      %s175 = scalar_lea.vmem %s0, %s174
      %p176 = pneg %p37
      %p177 = pneg %p34
      %p178 = pneg %p58
      %p179 = pneg %p55
      %p180 = pneg %p79
      %p181 = pneg %p76
      %p182 = pneg %p105
      %p183 = pneg %p102
      %p184 = scmp.lt.s32.totalorder %s16, 1
      %s185 = scalar_select %p184, %s16, 1
      %s186 = smul.addr %s185, 8
      %s187 = smul.addr %s186, 8
      %s188 = scalar_lea.vmem %s3, %s187
      %p189 = pneg %p131
      %p190 = pneg %p128
      %p191 = scmp.lt.s32.totalorder %s16, 1
      %s192 = scalar_select %p191, %s16, 1
      %s193 = smul.addr %s192, 2
      %s194 = scalar_lea.vmem %s4, %s193
      %p195 = scmp.lt.s32.totalorder %s16, 1
      %s196 = scalar_select %p195, %s16, 1
      %s197 = smul.addr %s196, 18
      %s198 = smul.addr %s197, 8
      %s199 = scalar_lea.vmem %s0, %s198
      %p200 = scmp.lt.s32.totalorder %s16, 1
      %s201 = scalar_select %p200, %s16, 1
      %s202 = smul.addr %s201, 8
      %s203 = smul.addr %s202, 8
      %s204 = scalar_lea.vmem %s3, %s203
      %p205 = scmp.lt.s32.totalorder %s16, 1
      %s206 = scalar_select %p205, %s16, 1
      %s207 = smul.addr %s206, 2
      %s208 = scalar_lea.vmem %s4, %s207
      %p209 = scmp.eq.s32.totalorder %s16, 0
      // Predicated region
      $region33: #{unet_innermost_forward.1} parent=31 // pred_check
        %p210 = pneg %p209
      $region34: #{unet_innermost_forward.1} parent=31 // pred_check_branch
        %212 = sbr.rel (%p210) target = $region36
      $region35: #{unet_innermost_forward.1} parent=31 // pred_region
        %vm213 = vcmask 64512
        %214 = vst.msk [vmem:[#allocation2] sm:$0xff] %vm213, 0.0
        %vm215 = vcmask 58368
        %216 = vst.msk [vmem:[#allocation2 + $0x8] sm:$0x3] %vm215, 0.0
        %217 = vst.msk [vmem:[#allocation2 + $0x10] sm:$0xff] %vm213, 0.0
        %218 = vst.msk [vmem:[#allocation2 + $0x18] sm:$0x3] %vm215, 0.0
        %219 = vst.msk [vmem:[#allocation2 + $0x20] sm:$0xff] %vm213, 0.0
        %220 = vst.msk [vmem:[#allocation2 + $0x28] sm:$0x3] %vm215, 0.0
        %221 = vst.msk [vmem:[#allocation2 + $0x30] sm:$0xff] %vm213, 0.0
        %222 = vst.msk [vmem:[#allocation2 + $0x38] sm:$0x3] %vm215, 0.0
        %223 = vst.msk [vmem:[#allocation2 + $0x40] sm:$0xff] %vm213, 0.0
        %224 = vst.msk [vmem:[#allocation2 + $0x48] sm:$0x3] %vm215, 0.0
        %225 = vst.msk [vmem:[#allocation2 + $0x50] sm:$0xff] %vm213, 0.0
        %226 = vst.msk [vmem:[#allocation2 + $0x58] sm:$0x3] %vm215, 0.0
        %227 = vst.msk [vmem:[#allocation2 + $0x60] sm:$0xff] %vm213, 0.0
        %228 = vst.msk [vmem:[#allocation2 + $0x68] sm:$0x3] %vm215, 0.0
        %229 = vst.msk [vmem:[#allocation2 + $0x70] sm:$0xff] %vm213, 0.0
        %230 = vst.msk [vmem:[#allocation2 + $0x78] sm:$0x3] %vm215, 0.0
        %231 = vst.msk [vmem:[#allocation2 + $0x80] sm:$0xff] %vm213, 0.0
        %232 = vst.msk [vmem:[#allocation2 + $0x88] sm:$0x3] %vm215, 0.0
        %233 = vst.msk [vmem:[#allocation2 + $0x90] sm:$0xff] %vm213, 0.0
        %234 = vst.msk [vmem:[#allocation2 + $0x98] sm:$0x3] %vm215, 0.0
      $region36: #{unet_innermost_forward.1} parent=31 // pred_fallthru
        _
      %v235 = vld [vmem:[%s199] sm:$0xff]
      %v236 = vld [vmem:[%s199 + $0x8] sm:$0x1]
      %v237 = vld [vmem:[%s199 + $0x10] sm:$0xff]
      %v238 = vld [vmem:[%s199 + $0x18] sm:$0x1]
      %v239 = vld [vmem:[%s199 + $0x20] sm:$0xff]
      %v240 = vld [vmem:[%s199 + $0x28] sm:$0x1]
      %v241 = vld [vmem:[%s199 + $0x30] sm:$0xff]
      %v242 = vld [vmem:[%s199 + $0x38] sm:$0x1]
      %v243 = vld [vmem:[%s199 + $0x40] sm:$0xff]
      %v244 = vld [vmem:[%s199 + $0x48] sm:$0x1]
      %v245 = vld [vmem:[%s199 + $0x50] sm:$0xff]
      %v246 = vld [vmem:[%s199 + $0x58] sm:$0x1]
      %v247 = vld [vmem:[%s199 + $0x60] sm:$0xff]
      %v248 = vld [vmem:[%s199 + $0x68] sm:$0x1]
      %v249 = vld [vmem:[%s199 + $0x70] sm:$0xff]
      %v250 = vld [vmem:[%s199 + $0x78] sm:$0x1]
      %v251 = vld [vmem:[%s199 + $0x80] sm:$0xff]
      %v252 = vld [vmem:[%s199 + $0x88] sm:$0x1]
      %vm253 = vcmp.ge.f32.partialorder %v235, 0.0
      %vm254 = vcmp.ge.f32.partialorder %v236, 0.0
      %vm255 = vcmp.ge.f32.partialorder %v237, 0.0
      %vm256 = vcmp.ge.f32.partialorder %v238, 0.0
      %vm257 = vcmp.ge.f32.partialorder %v239, 0.0
      %vm258 = vcmp.ge.f32.partialorder %v240, 0.0
      %vm259 = vcmp.ge.f32.partialorder %v241, 0.0
      %vm260 = vcmp.ge.f32.partialorder %v242, 0.0
      %vm261 = vcmp.ge.f32.partialorder %v243, 0.0
      %vm262 = vcmp.ge.f32.partialorder %v244, 0.0
      %vm263 = vcmp.ge.f32.partialorder %v245, 0.0
      %vm264 = vcmp.ge.f32.partialorder %v246, 0.0
      %vm265 = vcmp.ge.f32.partialorder %v247, 0.0
      %vm266 = vcmp.ge.f32.partialorder %v248, 0.0
      %vm267 = vcmp.ge.f32.partialorder %v249, 0.0
      %vm268 = vcmp.ge.f32.partialorder %v250, 0.0
      %vm269 = vcmp.ge.f32.partialorder %v251, 0.0
      %vm270 = vcmp.ge.f32.partialorder %v252, 0.0
      %v271 = vmul.f32 %v235, 0.2
      %v272 = vmul.f32 %v236, 0.2
      %v273 = vmul.f32 %v237, 0.2
      %v274 = vmul.f32 %v238, 0.2
      %v275 = vmul.f32 %v239, 0.2
      %v276 = vmul.f32 %v240, 0.2
      %v277 = vmul.f32 %v241, 0.2
      %v278 = vmul.f32 %v242, 0.2
      %v279 = vmul.f32 %v243, 0.2
      %v280 = vmul.f32 %v244, 0.2
      %v281 = vmul.f32 %v245, 0.2
      %v282 = vmul.f32 %v246, 0.2
      %v283 = vmul.f32 %v247, 0.2
      %v284 = vmul.f32 %v248, 0.2
      %v285 = vmul.f32 %v249, 0.2
      %v286 = vmul.f32 %v250, 0.2
      %v287 = vmul.f32 %v251, 0.2
      %v288 = vmul.f32 %v252, 0.2
      %v289 = vsel %vm253, %v235, %v271
      %v290 = vsel %vm254, %v236, %v272
      %v291 = vsel %vm255, %v237, %v273
      %v292 = vsel %vm256, %v238, %v274
      %v293 = vsel %vm257, %v239, %v275
      %v294 = vsel %vm258, %v240, %v276
      %v295 = vsel %vm259, %v241, %v277
      %v296 = vsel %vm260, %v242, %v278
      %v297 = vsel %vm261, %v243, %v279
      %v298 = vsel %vm262, %v244, %v280
      %v299 = vsel %vm263, %v245, %v281
      %v300 = vsel %vm264, %v246, %v282
      %v301 = vsel %vm265, %v247, %v283
      %v302 = vsel %vm266, %v248, %v284
      %v303 = vsel %vm267, %v249, %v285
      %v304 = vsel %vm268, %v250, %v286
      %v305 = vsel %vm269, %v251, %v287
      %v306 = vsel %vm270, %v252, %v288
      %vm323 = vcmask 1046528
      %v324 = vrot.slane %v289, 1
      %v325 = vrot.slane %v290, 1
      %v326 = vsel %vm323, %v324, %v325
      %v327 = vrot.slane %v291, 1
      %v328 = vrot.slane %v292, 1
      %v329 = vsel %vm323, %v327, %v328
      %v330 = vrot.slane %v293, 1
      %v331 = vrot.slane %v294, 1
      %v332 = vsel %vm323, %v330, %v331
      %v333 = vrot.slane %v295, 1
      %v334 = vrot.slane %v296, 1
      %v335 = vsel %vm323, %v333, %v334
      %v336 = vrot.slane %v297, 1
      %v337 = vrot.slane %v298, 1
      %v338 = vsel %vm323, %v336, %v337
      %v339 = vrot.slane %v299, 1
      %v340 = vrot.slane %v300, 1
      %v341 = vsel %vm323, %v339, %v340
      %v342 = vrot.slane %v301, 1
      %v343 = vrot.slane %v302, 1
      %v344 = vsel %vm323, %v342, %v343
      %v345 = vrot.slane %v303, 1
      %v346 = vrot.slane %v304, 1
      %v347 = vsel %vm323, %v345, %v346
      %v350 = vrot.slane %v305, 1
      %v351 = vrot.slane %v306, 1
      %v352 = vsel %vm323, %v350, %v351
      %353 = vrot.lane.b32.xlu0 %v326, 16
      %v354 = vpop.permute.xlu0 %353
      %355 = vrot.lane.b32.xlu0 %v329, 16
      %v356 = vpop.permute.xlu0 %355
      %357 = vrot.lane.b32.xlu0 %v332, 16
      %v358 = vpop.permute.xlu0 %357
      %359 = vrot.lane.b32.xlu0 %v335, 16
      %v360 = vpop.permute.xlu0 %359
      %361 = vrot.lane.b32.xlu0 %v338, 16
      %v362 = vpop.permute.xlu0 %361
      %363 = vrot.lane.b32.xlu0 %v341, 16
      %v364 = vpop.permute.xlu0 %363
      %365 = vrot.lane.b32.xlu0 %v344, 16
      %v366 = vpop.permute.xlu0 %365
      %367 = vrot.lane.b32.xlu0 %v347, 16
      %v368 = vpop.permute.xlu0 %367
      %377 = vrot.lane.b32.xlu0 %v291, 32
      %v378 = vpop.permute.xlu0 %377
      %379 = vrot.lane.b32.xlu0 %v293, 32
      %v380 = vpop.permute.xlu0 %379
      %381 = vrot.lane.b32.xlu0 %v295, 32
      %v382 = vpop.permute.xlu0 %381
      %383 = vrot.lane.b32.xlu0 %v297, 32
      %v384 = vpop.permute.xlu0 %383
      %385 = vrot.lane.b32.xlu0 %v299, 32
      %v386 = vpop.permute.xlu0 %385
      %387 = vrot.lane.b32.xlu0 %v301, 32
      %v388 = vpop.permute.xlu0 %387
      %389 = vrot.lane.b32.xlu0 %v303, 32
      %v390 = vpop.permute.xlu0 %389
      %391 = vrot.lane.b32.xlu0 %v305, 32
      %v392 = vpop.permute.xlu0 %391
      %401 = vrot.lane.b32.xlu0 %v329, 48
      %v402 = vpop.permute.xlu0 %401
      %403 = vrot.lane.b32.xlu0 %v332, 48
      %v404 = vpop.permute.xlu0 %403
      %405 = vrot.lane.b32.xlu0 %v335, 48
      %v406 = vpop.permute.xlu0 %405
      %407 = vrot.lane.b32.xlu0 %v338, 48
      %v408 = vpop.permute.xlu0 %407
      %409 = vrot.lane.b32.xlu0 %v341, 48
      %v410 = vpop.permute.xlu0 %409
      %411 = vrot.lane.b32.xlu0 %v344, 48
      %v412 = vpop.permute.xlu0 %411
      %413 = vrot.lane.b32.xlu0 %v347, 48
      %v414 = vpop.permute.xlu0 %413
      %415 = vrot.lane.b32.xlu0 %v352, 48
      %v416 = vpop.permute.xlu0 %415
      %vm425 = vcmask 130048
      %v426 = vsel %vm425, %v289, %v354
      %v427 = vsel %vm425, %v291, %v356
      %v428 = vsel %vm425, %v293, %v358
      %v429 = vsel %vm425, %v295, %v360
      %v430 = vsel %vm425, %v297, %v362
      %v431 = vsel %vm425, %v299, %v364
      %v432 = vsel %vm425, %v301, %v366
      %v433 = vsel %vm425, %v303, %v368
      %vm434 = vcmask 261120
      %v435 = vsel %vm434, %v426, %v378
      %v436 = vsel %vm434, %v427, %v380
      %v437 = vsel %vm434, %v428, %v382
      %v438 = vsel %vm434, %v429, %v384
      %v439 = vsel %vm434, %v430, %v386
      %v440 = vsel %vm434, %v431, %v388
      %v441 = vsel %vm434, %v432, %v390
      %v442 = vsel %vm434, %v433, %v392
      %vm443 = vcmask 392192
      %v444 = vsel %vm443, %v435, %v402
      %v445 = vsel %vm443, %v436, %v404
      %v446 = vsel %vm443, %v437, %v406
      %v447 = vsel %vm443, %v438, %v408
      %v448 = vsel %vm443, %v439, %v410
      %v449 = vsel %vm443, %v440, %v412
      %v450 = vsel %vm443, %v441, %v414
      %v451 = vsel %vm443, %v442, %v416
      %v452 = vld [vmem:[%s1] sm:$0xff]
      %v453 = vld [vmem:[%s1 + $0x8] sm:$0xff]
      %v454 = vld [vmem:[%s1 + $0x10] sm:$0xff]
      %v455 = vld [vmem:[%s1 + $0x18] sm:$0xff]
      %v456 = vld [vmem:[%s1 + $0x20] sm:$0xff]
      %v457 = vld [vmem:[%s1 + $0x28] sm:$0xff]
      %v458 = vld [vmem:[%s1 + $0x30] sm:$0xff]
      %v459 = vld [vmem:[%s1 + $0x38] sm:$0xff]
      %vm460 = vcmask 523264
      %v462 = vsel %vm460, %v444, 0
      %v465 = vsel %vm460, %v445, 0
      %v468 = vsel %vm460, %v446, 0
      %v471 = vsel %vm460, %v447, 0
      %v474 = vsel %vm460, %v448, 0
      %v477 = vsel %vm460, %v449, 0
      %v480 = vsel %vm460, %v450, 0
      %v483 = vsel %vm460, %v451, 0
      %485 = vmatpush.msra.mxu0 0.0
      %486 = vmatpush.msra.mxu0 0.0
      %487 = vmatpush.msra.mxu0 0.0
      %488 = vmatpush.msra.mxu0 0.0
      %489 = vmatpush.msra.mxu0 0.0
      %490 = vmatpush.msra.mxu0 0.0
      %491 = vmatpush.msra.mxu0 0.0
      %492 = vmatpush.msra.mxu0 0.0
      %493 = vmatpush.msra.mxu0 %v459
      %494 = vmatpush.msra.mxu0 %v458
      %495 = vmatpush.msra.mxu0 %v457
      %496 = vmatpush.msra.mxu0 %v456
      %497 = vmatpush.msra.mxu0 %v455
      %498 = vmatpush.msra.mxu0 %v454
      %499 = vmatpush.msra.mxu0 %v453
      %500 = vmatpush.msra.mxu0 %v452
      %501 = vmatmul.f32.gmra.mxu0 %v462
      %v502 = vpop.f32.mrf.mxu0
      %v503 = vadd.f32 0.0, %v502
      %504 = vmatmul.f32.gmra.mxu0 %v465
      %v505 = vpop.f32.mrf.mxu0
      %v506 = vadd.f32 0.0, %v505
      %507 = vmatmul.f32.gmra.mxu0 %v468
      %v508 = vpop.f32.mrf.mxu0
      %v509 = vadd.f32 0.0, %v508
      %510 = vmatmul.f32.gmra.mxu0 %v471
      %v511 = vpop.f32.mrf.mxu0
      %v512 = vadd.f32 0.0, %v511
      %513 = vmatmul.f32.gmra.mxu0 %v474
      %v514 = vpop.f32.mrf.mxu0
      %v515 = vadd.f32 0.0, %v514
      %516 = vmatmul.f32.gmra.mxu0 %v477
      %v517 = vpop.f32.mrf.mxu0
      %v518 = vadd.f32 0.0, %v517
      %519 = vmatmul.f32.gmra.mxu0 %v480
      %v520 = vpop.f32.mrf.mxu0
      %v521 = vadd.f32 0.0, %v520
      %522 = vmatmul.f32.gmra.mxu0 %v483
      %v523 = vpop.f32.mrf.mxu0
      %v524 = vadd.f32 0.0, %v523
      %525 = vdwg.mxu0
      %v526 = vmax.f32 %v503, 0.0
      %v527 = vmax.f32 %v506, 0.0
      %v528 = vmax.f32 %v509, 0.0
      %v529 = vmax.f32 %v512, 0.0
      %v530 = vmax.f32 %v515, 0.0
      %v531 = vmax.f32 %v518, 0.0
      %v532 = vmax.f32 %v521, 0.0
      %v533 = vmax.f32 %v524, 0.0
      %s534 = scalar_lea.vmem [#allocation2], 16
      %vm535 = vcmask 64512
      %536 = vst.msk [vmem:[%s534 + $0x1] sm:$0xff] %vm535, %v526
      %537 = vst.msk [vmem:[%s534 + $0x11] sm:$0xff] %vm535, %v527
      %538 = vst.msk [vmem:[%s534 + $0x21] sm:$0xff] %vm535, %v528
      %539 = vst.msk [vmem:[%s534 + $0x31] sm:$0xff] %vm535, %v529
      %540 = vst.msk [vmem:[%s534 + $0x41] sm:$0xff] %vm535, %v530
      %541 = vst.msk [vmem:[%s534 + $0x51] sm:$0xff] %vm535, %v531
      %542 = vst.msk [vmem:[%s534 + $0x61] sm:$0xff] %vm535, %v532
      %543 = vst.msk [vmem:[%s534 + $0x71] sm:$0xff] %vm535, %v533
      %v544 = vld [vmem:[#allocation2] sm:$0xff]
      %v545 = vld [vmem:[#allocation2 + $0x8] sm:$0x3]
      %v546 = vld [vmem:[#allocation2 + $0x10] sm:$0xff]
      %v547 = vld [vmem:[#allocation2 + $0x18] sm:$0x3]
      %v548 = vld [vmem:[#allocation2 + $0x20] sm:$0xff]
      %v549 = vld [vmem:[#allocation2 + $0x28] sm:$0x3]
      %v550 = vld [vmem:[#allocation2 + $0x30] sm:$0xff]
      %v551 = vld [vmem:[#allocation2 + $0x38] sm:$0x3]
      %v552 = vld [vmem:[#allocation2 + $0x40] sm:$0xff]
      %v553 = vld [vmem:[#allocation2 + $0x48] sm:$0x3]
      %v554 = vld [vmem:[#allocation2 + $0x50] sm:$0xff]
      %v555 = vld [vmem:[#allocation2 + $0x58] sm:$0x3]
      %v556 = vld [vmem:[#allocation2 + $0x60] sm:$0xff]
      %v557 = vld [vmem:[#allocation2 + $0x68] sm:$0x3]
      %v558 = vld [vmem:[#allocation2 + $0x70] sm:$0xff]
      %v559 = vld [vmem:[#allocation2 + $0x78] sm:$0x3]
      %v560 = vld [vmem:[#allocation2 + $0x80] sm:$0xff]
      %v561 = vld [vmem:[#allocation2 + $0x88] sm:$0x3]
      %v562 = vld [vmem:[#allocation2 + $0x90] sm:$0xff]
      %v563 = vld [vmem:[#allocation2 + $0x98] sm:$0x3]
      %v580 = vrot.slane %v544, 1
      %v581 = vrot.slane %v545, 1
      %v582 = vsel %vm323, %v580, %v581
      %v583 = vrot.slane %v546, 1
      %v584 = vrot.slane %v547, 1
      %v585 = vsel %vm323, %v583, %v584
      %v586 = vrot.slane %v548, 1
      %v587 = vrot.slane %v549, 1
      %v588 = vsel %vm323, %v586, %v587
      %v589 = vrot.slane %v550, 1
      %v590 = vrot.slane %v551, 1
      %v591 = vsel %vm323, %v589, %v590
      %v592 = vrot.slane %v552, 1
      %v593 = vrot.slane %v553, 1
      %v594 = vsel %vm323, %v592, %v593
      %v595 = vrot.slane %v554, 1
      %v596 = vrot.slane %v555, 1
      %v597 = vsel %vm323, %v595, %v596
      %v598 = vrot.slane %v556, 1
      %v599 = vrot.slane %v557, 1
      %v600 = vsel %vm323, %v598, %v599
      %v601 = vrot.slane %v558, 1
      %v602 = vrot.slane %v559, 1
      %v603 = vsel %vm323, %v601, %v602
      %v614 = vrot.slane %v560, 1
      %v615 = vrot.slane %v561, 1
      %v616 = vsel %vm323, %v614, %v615
      %618 = vrot.lane.b32.xlu0 %v582, 8
      %v619 = vpop.permute.xlu0 %618
      %620 = vrot.lane.b32.xlu0 %v585, 8
      %v621 = vpop.permute.xlu0 %620
      %622 = vrot.lane.b32.xlu0 %v588, 8
      %v623 = vpop.permute.xlu0 %622
      %624 = vrot.lane.b32.xlu0 %v591, 8
      %v625 = vpop.permute.xlu0 %624
      %626 = vrot.lane.b32.xlu0 %v594, 8
      %v627 = vpop.permute.xlu0 %626
      %628 = vrot.lane.b32.xlu0 %v597, 8
      %v629 = vpop.permute.xlu0 %628
      %630 = vrot.lane.b32.xlu0 %v600, 8
      %v631 = vpop.permute.xlu0 %630
      %632 = vrot.lane.b32.xlu0 %v603, 8
      %v633 = vpop.permute.xlu0 %632
      %642 = vrot.lane.b32.xlu0 %v546, 16
      %v643 = vpop.permute.xlu0 %642
      %644 = vrot.lane.b32.xlu0 %v548, 16
      %v645 = vpop.permute.xlu0 %644
      %646 = vrot.lane.b32.xlu0 %v550, 16
      %v647 = vpop.permute.xlu0 %646
      %648 = vrot.lane.b32.xlu0 %v552, 16
      %v649 = vpop.permute.xlu0 %648
      %650 = vrot.lane.b32.xlu0 %v554, 16
      %v651 = vpop.permute.xlu0 %650
      %652 = vrot.lane.b32.xlu0 %v556, 16
      %v653 = vpop.permute.xlu0 %652
      %654 = vrot.lane.b32.xlu0 %v558, 16
      %v655 = vpop.permute.xlu0 %654
      %656 = vrot.lane.b32.xlu0 %v560, 16
      %v657 = vpop.permute.xlu0 %656
      %666 = vrot.lane.b32.xlu0 %v585, 24
      %v667 = vpop.permute.xlu0 %666
      %668 = vrot.lane.b32.xlu0 %v588, 24
      %v669 = vpop.permute.xlu0 %668
      %670 = vrot.lane.b32.xlu0 %v591, 24
      %v671 = vpop.permute.xlu0 %670
      %672 = vrot.lane.b32.xlu0 %v594, 24
      %v673 = vpop.permute.xlu0 %672
      %674 = vrot.lane.b32.xlu0 %v597, 24
      %v675 = vpop.permute.xlu0 %674
      %676 = vrot.lane.b32.xlu0 %v600, 24
      %v677 = vpop.permute.xlu0 %676
      %678 = vrot.lane.b32.xlu0 %v603, 24
      %v679 = vpop.permute.xlu0 %678
      %680 = vrot.lane.b32.xlu0 %v616, 24
      %v681 = vpop.permute.xlu0 %680
      %v690 = vsel %vm535, %v544, %v619
      %v691 = vsel %vm535, %v546, %v621
      %v692 = vsel %vm535, %v548, %v623
      %v693 = vsel %vm535, %v550, %v625
      %v694 = vsel %vm535, %v552, %v627
      %v695 = vsel %vm535, %v554, %v629
      %v696 = vsel %vm535, %v556, %v631
      %v697 = vsel %vm535, %v558, %v633
      %v698 = vsel %vm425, %v690, %v643
      %v699 = vsel %vm425, %v691, %v645
      %v700 = vsel %vm425, %v692, %v647
      %v701 = vsel %vm425, %v693, %v649
      %v702 = vsel %vm425, %v694, %v651
      %v703 = vsel %vm425, %v695, %v653
      %v704 = vsel %vm425, %v696, %v655
      %v705 = vsel %vm425, %v697, %v657
      %vm706 = vcmask 195584
      %v707 = vsel %vm706, %v698, %v667
      %v708 = vsel %vm706, %v699, %v669
      %v709 = vsel %vm706, %v700, %v671
      %v710 = vsel %vm706, %v701, %v673
      %v711 = vsel %vm706, %v702, %v675
      %v712 = vsel %vm706, %v703, %v677
      %v713 = vsel %vm706, %v704, %v679
      %v714 = vsel %vm706, %v705, %v681
      %v715 = vld [vmem:[%s2] sm:$0xff]
      %v716 = vld [vmem:[%s2 + $0x8] sm:$0xff]
      %v717 = vld [vmem:[%s2 + $0x10] sm:$0xff]
      %v718 = vld [vmem:[%s2 + $0x18] sm:$0xff]
      %v720 = vsel %vm434, %v707, 0
      %v723 = vsel %vm434, %v708, 0
      %v726 = vsel %vm434, %v709, 0
      %v729 = vsel %vm434, %v710, 0
      %v732 = vsel %vm434, %v711, 0
      %v735 = vsel %vm434, %v712, 0
      %v738 = vsel %vm434, %v713, 0
      %v741 = vsel %vm434, %v714, 0
      %743 = vmatpush.msra.mxu0 0.0
      %744 = vmatpush.msra.mxu0 0.0
      %745 = vmatpush.msra.mxu0 0.0
      %746 = vmatpush.msra.mxu0 0.0
      %747 = vmatpush.msra.mxu0 0.0
      %748 = vmatpush.msra.mxu0 0.0
      %749 = vmatpush.msra.mxu0 0.0
      %750 = vmatpush.msra.mxu0 0.0
      %751 = vmatpush.msra.mxu0 0.0
      %752 = vmatpush.msra.mxu0 0.0
      %753 = vmatpush.msra.mxu0 0.0
      %754 = vmatpush.msra.mxu0 0.0
      %755 = vmatpush.msra.mxu0 %v718
      %756 = vmatpush.msra.mxu0 %v717
      %757 = vmatpush.msra.mxu0 %v716
      %758 = vmatpush.msra.mxu0 %v715
      %759 = vmatmul.f32.gmra.mxu0 %v720
      %v760 = vpop.f32.mrf.mxu0
      %v761 = vadd.f32 0.0, %v760
      %762 = vmatmul.f32.gmra.mxu0 %v723
      %v763 = vpop.f32.mrf.mxu0
      %v764 = vadd.f32 0.0, %v763
      %765 = vmatmul.f32.gmra.mxu0 %v726
      %v766 = vpop.f32.mrf.mxu0
      %v767 = vadd.f32 0.0, %v766
      %768 = vmatmul.f32.gmra.mxu0 %v729
      %v769 = vpop.f32.mrf.mxu0
      %v770 = vadd.f32 0.0, %v769
      %771 = vmatmul.f32.gmra.mxu0 %v732
      %v772 = vpop.f32.mrf.mxu0
      %v773 = vadd.f32 0.0, %v772
      %774 = vmatmul.f32.gmra.mxu0 %v735
      %v775 = vpop.f32.mrf.mxu0
      %v776 = vadd.f32 0.0, %v775
      %777 = vmatmul.f32.gmra.mxu0 %v738
      %v778 = vpop.f32.mrf.mxu0
      %v779 = vadd.f32 0.0, %v778
      %780 = vmatmul.f32.gmra.mxu0 %v741
      %v781 = vpop.f32.mrf.mxu0
      %v782 = vadd.f32 0.0, %v781
      %783 = vdwg.mxu0
      %vm784 = vcmask 31744
      %v785 = vsel %vm784, %v761, 0.0
      %v786 = vsel %vm784, %v764, 0.0
      %v787 = vadd.f32 %v785, %v786
      %v788 = vsel %vm784, %v767, 0.0
      %v789 = vadd.f32 %v787, %v788
      %v790 = vsel %vm784, %v770, 0.0
      %v791 = vadd.f32 %v789, %v790
      %v792 = vsel %vm784, %v773, 0.0
      %v793 = vadd.f32 %v791, %v792
      %v794 = vsel %vm784, %v776, 0.0
      %v795 = vadd.f32 %v793, %v794
      %v796 = vsel %vm784, %v779, 0.0
      %v797 = vadd.f32 %v795, %v796
      %v798 = vsel %vm784, %v782, 0.0
      %v799 = vadd.f32 %v797, %v798
      %v800 = vrot.slane %v799, 4
      %v801 = vadd.f32 %v799, %v800
      %v802 = vrot.slane %v801, 2
      %v803 = vadd.f32 %v801, %v802
      %v804 = vrot.slane %v803, 1
      %v805 = vadd.f32 %v803, %v804
      %v806 = vadd.f32 %v805, 0.0
      %v807 = vmul.f32 %v761, %v761
      %v808 = vmul.f32 %v764, %v764
      %v809 = vmul.f32 %v767, %v767
      %v810 = vmul.f32 %v770, %v770
      %v811 = vmul.f32 %v773, %v773
      %v812 = vmul.f32 %v776, %v776
      %v813 = vmul.f32 %v779, %v779
      %v814 = vmul.f32 %v782, %v782
      %v815 = vsel %vm784, %v807, 0.0
      %v816 = vsel %vm784, %v808, 0.0
      %v817 = vadd.f32 %v815, %v816
      %v818 = vsel %vm784, %v809, 0.0
      %v819 = vadd.f32 %v817, %v818
      %v820 = vsel %vm784, %v810, 0.0
      %v821 = vadd.f32 %v819, %v820
      %v822 = vsel %vm784, %v811, 0.0
      %v823 = vadd.f32 %v821, %v822
      %v824 = vsel %vm784, %v812, 0.0
      %v825 = vadd.f32 %v823, %v824
      %v826 = vsel %vm784, %v813, 0.0
      %v827 = vadd.f32 %v825, %v826
      %v828 = vsel %vm784, %v814, 0.0
      %v829 = vadd.f32 %v827, %v828
      %v830 = vrot.slane %v829, 4
      %v831 = vadd.f32 %v829, %v830
      %v832 = vrot.slane %v831, 2
      %v833 = vadd.f32 %v831, %v832
      %v834 = vrot.slane %v833, 1
      %v835 = vadd.f32 %v833, %v834
      %v836 = vadd.f32 %v835, 0.0
      %vm837 = vcmask 1045504
      %v838 = vrot.slane %v544, 2
      %v839 = vrot.slane %v545, 2
      %v840 = vsel %vm837, %v838, %v839
      %v841 = vrot.slane %v546, 2
      %v842 = vrot.slane %v547, 2
      %v843 = vsel %vm837, %v841, %v842
      %v844 = vrot.slane %v548, 2
      %v845 = vrot.slane %v549, 2
      %v846 = vsel %vm837, %v844, %v845
      %v847 = vrot.slane %v550, 2
      %v848 = vrot.slane %v551, 2
      %v849 = vsel %vm837, %v847, %v848
      %v850 = vrot.slane %v552, 2
      %v851 = vrot.slane %v553, 2
      %v852 = vsel %vm837, %v850, %v851
      %v853 = vrot.slane %v554, 2
      %v854 = vrot.slane %v555, 2
      %v855 = vsel %vm837, %v853, %v854
      %v856 = vrot.slane %v556, 2
      %v857 = vrot.slane %v557, 2
      %v858 = vsel %vm837, %v856, %v857
      %v859 = vrot.slane %v558, 2
      %v860 = vrot.slane %v559, 2
      %v861 = vsel %vm837, %v859, %v860
      %v862 = vrot.slane %v560, 2
      %v863 = vrot.slane %v561, 2
      %v864 = vsel %vm837, %v862, %v863
      %865 = vrot.lane.b32.xlu0 %v840, 8
      %v866 = vpop.permute.xlu0 %865
      %867 = vrot.lane.b32.xlu0 %v843, 8
      %v868 = vpop.permute.xlu0 %867
      %869 = vrot.lane.b32.xlu0 %v846, 8
      %v870 = vpop.permute.xlu0 %869
      %871 = vrot.lane.b32.xlu0 %v849, 8
      %v872 = vpop.permute.xlu0 %871
      %873 = vrot.lane.b32.xlu0 %v852, 8
      %v874 = vpop.permute.xlu0 %873
      %875 = vrot.lane.b32.xlu0 %v855, 8
      %v876 = vpop.permute.xlu0 %875
      %877 = vrot.lane.b32.xlu0 %v858, 8
      %v878 = vpop.permute.xlu0 %877
      %879 = vrot.lane.b32.xlu0 %v861, 8
      %v880 = vpop.permute.xlu0 %879
      %889 = vrot.lane.b32.xlu0 %v585, 16
      %v890 = vpop.permute.xlu0 %889
      %891 = vrot.lane.b32.xlu0 %v588, 16
      %v892 = vpop.permute.xlu0 %891
      %893 = vrot.lane.b32.xlu0 %v591, 16
      %v894 = vpop.permute.xlu0 %893
      %895 = vrot.lane.b32.xlu0 %v594, 16
      %v896 = vpop.permute.xlu0 %895
      %897 = vrot.lane.b32.xlu0 %v597, 16
      %v898 = vpop.permute.xlu0 %897
      %899 = vrot.lane.b32.xlu0 %v600, 16
      %v900 = vpop.permute.xlu0 %899
      %901 = vrot.lane.b32.xlu0 %v603, 16
      %v902 = vpop.permute.xlu0 %901
      %903 = vrot.lane.b32.xlu0 %v616, 16
      %v904 = vpop.permute.xlu0 %903
      %913 = vrot.lane.b32.xlu0 %v843, 24
      %v914 = vpop.permute.xlu0 %913
      %915 = vrot.lane.b32.xlu0 %v846, 24
      %v916 = vpop.permute.xlu0 %915
      %917 = vrot.lane.b32.xlu0 %v849, 24
      %v918 = vpop.permute.xlu0 %917
      %919 = vrot.lane.b32.xlu0 %v852, 24
      %v920 = vpop.permute.xlu0 %919
      %921 = vrot.lane.b32.xlu0 %v855, 24
      %v922 = vpop.permute.xlu0 %921
      %923 = vrot.lane.b32.xlu0 %v858, 24
      %v924 = vpop.permute.xlu0 %923
      %925 = vrot.lane.b32.xlu0 %v861, 24
      %v926 = vpop.permute.xlu0 %925
      %927 = vrot.lane.b32.xlu0 %v864, 24
      %v928 = vpop.permute.xlu0 %927
      %v937 = vsel %vm535, %v582, %v866
      %v938 = vsel %vm535, %v585, %v868
      %v939 = vsel %vm535, %v588, %v870
      %v940 = vsel %vm535, %v591, %v872
      %v941 = vsel %vm535, %v594, %v874
      %v942 = vsel %vm535, %v597, %v876
      %v943 = vsel %vm535, %v600, %v878
      %v944 = vsel %vm535, %v603, %v880
      %v945 = vsel %vm425, %v937, %v890
      %v946 = vsel %vm425, %v938, %v892
      %v947 = vsel %vm425, %v939, %v894
      %v948 = vsel %vm425, %v940, %v896
      %v949 = vsel %vm425, %v941, %v898
      %v950 = vsel %vm425, %v942, %v900
      %v951 = vsel %vm425, %v943, %v902
      %v952 = vsel %vm425, %v944, %v904
      %v953 = vsel %vm706, %v945, %v914
      %v954 = vsel %vm706, %v946, %v916
      %v955 = vsel %vm706, %v947, %v918
      %v956 = vsel %vm706, %v948, %v920
      %v957 = vsel %vm706, %v949, %v922
      %v958 = vsel %vm706, %v950, %v924
      %v959 = vsel %vm706, %v951, %v926
      %v960 = vsel %vm706, %v952, %v928
      %s961 = scalar_lea.vmem %s2, 32
      %v962 = vld [vmem:[%s961] sm:$0xff]
      %v963 = vld [vmem:[%s961 + $0x8] sm:$0xff]
      %v964 = vld [vmem:[%s961 + $0x10] sm:$0xff]
      %v965 = vld [vmem:[%s961 + $0x18] sm:$0xff]
      %v967 = vsel %vm434, %v953, 0
      %v970 = vsel %vm434, %v954, 0
      %v973 = vsel %vm434, %v955, 0
      %v976 = vsel %vm434, %v956, 0
      %v979 = vsel %vm434, %v957, 0
      %v982 = vsel %vm434, %v958, 0
      %v985 = vsel %vm434, %v959, 0
      %v988 = vsel %vm434, %v960, 0
      %990 = vmatpush.msra.mxu0 0.0
      %991 = vmatpush.msra.mxu0 0.0
      %992 = vmatpush.msra.mxu0 0.0
      %993 = vmatpush.msra.mxu0 0.0
      %994 = vmatpush.msra.mxu0 0.0
      %995 = vmatpush.msra.mxu0 0.0
      %996 = vmatpush.msra.mxu0 0.0
      %997 = vmatpush.msra.mxu0 0.0
      %998 = vmatpush.msra.mxu0 0.0
      %999 = vmatpush.msra.mxu0 0.0
      %1000 = vmatpush.msra.mxu0 0.0
      %1001 = vmatpush.msra.mxu0 0.0
      %1002 = vmatpush.msra.mxu0 %v965
      %1003 = vmatpush.msra.mxu0 %v964
      %1004 = vmatpush.msra.mxu0 %v963
      %1005 = vmatpush.msra.mxu0 %v962
      %1006 = vmatmul.f32.gmra.mxu0 %v967
      %v1007 = vpop.f32.mrf.mxu0
      %v1008 = vadd.f32 0.0, %v1007
      %1009 = vmatmul.f32.gmra.mxu0 %v970
      %v1010 = vpop.f32.mrf.mxu0
      %v1011 = vadd.f32 0.0, %v1010
      %1012 = vmatmul.f32.gmra.mxu0 %v973
      %v1013 = vpop.f32.mrf.mxu0
      %v1014 = vadd.f32 0.0, %v1013
      %1015 = vmatmul.f32.gmra.mxu0 %v976
      %v1016 = vpop.f32.mrf.mxu0
      %v1017 = vadd.f32 0.0, %v1016
      %1018 = vmatmul.f32.gmra.mxu0 %v979
      %v1019 = vpop.f32.mrf.mxu0
      %v1020 = vadd.f32 0.0, %v1019
      %1021 = vmatmul.f32.gmra.mxu0 %v982
      %v1022 = vpop.f32.mrf.mxu0
      %v1023 = vadd.f32 0.0, %v1022
      %1024 = vmatmul.f32.gmra.mxu0 %v985
      %v1025 = vpop.f32.mrf.mxu0
      %v1026 = vadd.f32 0.0, %v1025
      %1027 = vmatmul.f32.gmra.mxu0 %v988
      %v1028 = vpop.f32.mrf.mxu0
      %v1029 = vadd.f32 0.0, %v1028
      %1030 = vdwg.mxu0
      %v1031 = vsel %vm784, %v1008, 0.0
      %v1032 = vsel %vm784, %v1011, 0.0
      %v1033 = vadd.f32 %v1031, %v1032
      %v1034 = vsel %vm784, %v1014, 0.0
      %v1035 = vadd.f32 %v1033, %v1034
      %v1036 = vsel %vm784, %v1017, 0.0
      %v1037 = vadd.f32 %v1035, %v1036
      %v1038 = vsel %vm784, %v1020, 0.0
      %v1039 = vadd.f32 %v1037, %v1038
      %v1040 = vsel %vm784, %v1023, 0.0
      %v1041 = vadd.f32 %v1039, %v1040
      %v1042 = vsel %vm784, %v1026, 0.0
      %v1043 = vadd.f32 %v1041, %v1042
      %v1044 = vsel %vm784, %v1029, 0.0
      %v1045 = vadd.f32 %v1043, %v1044
      %v1046 = vrot.slane %v1045, 4
      %v1047 = vadd.f32 %v1045, %v1046
      %v1048 = vrot.slane %v1047, 2
      %v1049 = vadd.f32 %v1047, %v1048
      %v1050 = vrot.slane %v1049, 1
      %v1051 = vadd.f32 %v1049, %v1050
      %v1052 = vadd.f32 %v806, %v1051
      %v1053 = vmul.f32 %v1008, %v1008
      %v1054 = vmul.f32 %v1011, %v1011
      %v1055 = vmul.f32 %v1014, %v1014
      %v1056 = vmul.f32 %v1017, %v1017
      %v1057 = vmul.f32 %v1020, %v1020
      %v1058 = vmul.f32 %v1023, %v1023
      %v1059 = vmul.f32 %v1026, %v1026
      %v1060 = vmul.f32 %v1029, %v1029
      %v1061 = vsel %vm784, %v1053, 0.0
      %v1062 = vsel %vm784, %v1054, 0.0
      %v1063 = vadd.f32 %v1061, %v1062
      %v1064 = vsel %vm784, %v1055, 0.0
      %v1065 = vadd.f32 %v1063, %v1064
      %v1066 = vsel %vm784, %v1056, 0.0
      %v1067 = vadd.f32 %v1065, %v1066
      %v1068 = vsel %vm784, %v1057, 0.0
      %v1069 = vadd.f32 %v1067, %v1068
      %v1070 = vsel %vm784, %v1058, 0.0
      %v1071 = vadd.f32 %v1069, %v1070
      %v1072 = vsel %vm784, %v1059, 0.0
      %v1073 = vadd.f32 %v1071, %v1072
      %v1074 = vsel %vm784, %v1060, 0.0
      %v1075 = vadd.f32 %v1073, %v1074
      %v1076 = vrot.slane %v1075, 4
      %v1077 = vadd.f32 %v1075, %v1076
      %v1078 = vrot.slane %v1077, 2
      %v1079 = vadd.f32 %v1077, %v1078
      %v1080 = vrot.slane %v1079, 1
      %v1081 = vadd.f32 %v1079, %v1080
      %v1082 = vadd.f32 %v836, %v1081
      %v1085 = vrot.slane %v562, 1
      %v1086 = vrot.slane %v563, 1
      %v1087 = vsel %vm323, %v1085, %v1086
      %1088 = vrot.lane.b32.xlu0 %v616, 8
      %v1089 = vpop.permute.xlu0 %1088
      %1091 = vrot.lane.b32.xlu0 %v562, 16
      %v1092 = vpop.permute.xlu0 %1091
      %1094 = vrot.lane.b32.xlu0 %v1087, 24
      %v1095 = vpop.permute.xlu0 %1094
      %v1097 = vsel %vm535, %v560, %v1089
      %v1098 = vsel %vm425, %v1097, %v1092
      %v1099 = vsel %vm706, %v1098, %v1095
      %s1100 = scalar_lea.vmem %s2, 64
      %v1101 = vld [vmem:[%s1100] sm:$0xff]
      %v1102 = vld [vmem:[%s1100 + $0x8] sm:$0xff]
      %v1103 = vld [vmem:[%s1100 + $0x10] sm:$0xff]
      %v1104 = vld [vmem:[%s1100 + $0x18] sm:$0xff]
      %v1106 = vsel %vm434, %v1099, 0
      %1108 = vmatpush.msra.mxu0 0.0
      %1109 = vmatpush.msra.mxu0 0.0
      %1110 = vmatpush.msra.mxu0 0.0
      %1111 = vmatpush.msra.mxu0 0.0
      %1112 = vmatpush.msra.mxu0 0.0
      %1113 = vmatpush.msra.mxu0 0.0
      %1114 = vmatpush.msra.mxu0 0.0
      %1115 = vmatpush.msra.mxu0 0.0
      %1116 = vmatpush.msra.mxu0 0.0
      %1117 = vmatpush.msra.mxu0 0.0
      %1118 = vmatpush.msra.mxu0 0.0
      %1119 = vmatpush.msra.mxu0 0.0
      %1120 = vmatpush.msra.mxu0 %v1104
      %1121 = vmatpush.msra.mxu0 %v1103
      %1122 = vmatpush.msra.mxu0 %v1102
      %1123 = vmatpush.msra.mxu0 %v1101
      %1124 = vmatmul.f32.gmra.mxu0 %v723
      %v1125 = vpop.f32.mrf.mxu0
      %v1126 = vadd.f32 0.0, %v1125
      %1127 = vmatmul.f32.gmra.mxu0 %v726
      %v1128 = vpop.f32.mrf.mxu0
      %v1129 = vadd.f32 0.0, %v1128
      %1130 = vmatmul.f32.gmra.mxu0 %v729
      %v1131 = vpop.f32.mrf.mxu0
      %v1132 = vadd.f32 0.0, %v1131
      %1133 = vmatmul.f32.gmra.mxu0 %v732
      %v1134 = vpop.f32.mrf.mxu0
      %v1135 = vadd.f32 0.0, %v1134
      %1136 = vmatmul.f32.gmra.mxu0 %v735
      %v1137 = vpop.f32.mrf.mxu0
      %v1138 = vadd.f32 0.0, %v1137
      %1139 = vmatmul.f32.gmra.mxu0 %v738
      %v1140 = vpop.f32.mrf.mxu0
      %v1141 = vadd.f32 0.0, %v1140
      %1142 = vmatmul.f32.gmra.mxu0 %v741
      %v1143 = vpop.f32.mrf.mxu0
      %v1144 = vadd.f32 0.0, %v1143
      %1145 = vmatmul.f32.gmra.mxu0 %v1106
      %v1146 = vpop.f32.mrf.mxu0
      %v1147 = vadd.f32 0.0, %v1146
      %1148 = vdwg.mxu0
      %v1149 = vsel %vm784, %v1126, 0.0
      %v1150 = vsel %vm784, %v1129, 0.0
      %v1151 = vadd.f32 %v1149, %v1150
      %v1152 = vsel %vm784, %v1132, 0.0
      %v1153 = vadd.f32 %v1151, %v1152
      %v1154 = vsel %vm784, %v1135, 0.0
      %v1155 = vadd.f32 %v1153, %v1154
      %v1156 = vsel %vm784, %v1138, 0.0
      %v1157 = vadd.f32 %v1155, %v1156
      %v1158 = vsel %vm784, %v1141, 0.0
      %v1159 = vadd.f32 %v1157, %v1158
      %v1160 = vsel %vm784, %v1144, 0.0
      %v1161 = vadd.f32 %v1159, %v1160
      %v1162 = vsel %vm784, %v1147, 0.0
      %v1163 = vadd.f32 %v1161, %v1162
      %v1164 = vrot.slane %v1163, 4
      %v1165 = vadd.f32 %v1163, %v1164
      %v1166 = vrot.slane %v1165, 2
      %v1167 = vadd.f32 %v1165, %v1166
      %v1168 = vrot.slane %v1167, 1
      %v1169 = vadd.f32 %v1167, %v1168
      %v1170 = vadd.f32 %v1052, %v1169
      %v1171 = vmul.f32 %v1126, %v1126
      %v1172 = vmul.f32 %v1129, %v1129
      %v1173 = vmul.f32 %v1132, %v1132
      %v1174 = vmul.f32 %v1135, %v1135
      %v1175 = vmul.f32 %v1138, %v1138
      %v1176 = vmul.f32 %v1141, %v1141
      %v1177 = vmul.f32 %v1144, %v1144
      %v1178 = vmul.f32 %v1147, %v1147
      %v1179 = vsel %vm784, %v1171, 0.0
      %v1180 = vsel %vm784, %v1172, 0.0
      %v1181 = vadd.f32 %v1179, %v1180
      %v1182 = vsel %vm784, %v1173, 0.0
      %v1183 = vadd.f32 %v1181, %v1182
      %v1184 = vsel %vm784, %v1174, 0.0
      %v1185 = vadd.f32 %v1183, %v1184
      %v1186 = vsel %vm784, %v1175, 0.0
      %v1187 = vadd.f32 %v1185, %v1186
      %v1188 = vsel %vm784, %v1176, 0.0
      %v1189 = vadd.f32 %v1187, %v1188
      %v1190 = vsel %vm784, %v1177, 0.0
      %v1191 = vadd.f32 %v1189, %v1190
      %v1192 = vsel %vm784, %v1178, 0.0
      %v1193 = vadd.f32 %v1191, %v1192
      %v1194 = vrot.slane %v1193, 4
      %v1195 = vadd.f32 %v1193, %v1194
      %v1196 = vrot.slane %v1195, 2
      %v1197 = vadd.f32 %v1195, %v1196
      %v1198 = vrot.slane %v1197, 1
      %v1199 = vadd.f32 %v1197, %v1198
      %v1200 = vadd.f32 %v1082, %v1199
      %v1201 = vrot.slane %v562, 2
      %v1202 = vrot.slane %v563, 2
      %v1203 = vsel %vm837, %v1201, %v1202
      %1204 = vrot.lane.b32.xlu0 %v864, 8
      %v1205 = vpop.permute.xlu0 %1204
      %1207 = vrot.lane.b32.xlu0 %v1087, 16
      %v1208 = vpop.permute.xlu0 %1207
      %1210 = vrot.lane.b32.xlu0 %v1203, 24
      %v1211 = vpop.permute.xlu0 %1210
      %v1213 = vsel %vm535, %v616, %v1205
      %v1214 = vsel %vm425, %v1213, %v1208
      %v1215 = vsel %vm706, %v1214, %v1211
      %s1216 = scalar_lea.vmem %s2, 96
      %v1217 = vld [vmem:[%s1216] sm:$0xff]
      %v1218 = vld [vmem:[%s1216 + $0x8] sm:$0xff]
      %v1219 = vld [vmem:[%s1216 + $0x10] sm:$0xff]
      %v1220 = vld [vmem:[%s1216 + $0x18] sm:$0xff]
      %v1222 = vsel %vm434, %v1215, 0
      %1224 = vmatpush.msra.mxu0 0.0
      %1225 = vmatpush.msra.mxu0 0.0
      %1226 = vmatpush.msra.mxu0 0.0
      %1227 = vmatpush.msra.mxu0 0.0
      %1228 = vmatpush.msra.mxu0 0.0
      %1229 = vmatpush.msra.mxu0 0.0
      %1230 = vmatpush.msra.mxu0 0.0
      %1231 = vmatpush.msra.mxu0 0.0
      %1232 = vmatpush.msra.mxu0 0.0
      %1233 = vmatpush.msra.mxu0 0.0
      %1234 = vmatpush.msra.mxu0 0.0
      %1235 = vmatpush.msra.mxu0 0.0
      %1236 = vmatpush.msra.mxu0 %v1220
      %1237 = vmatpush.msra.mxu0 %v1219
      %1238 = vmatpush.msra.mxu0 %v1218
      %1239 = vmatpush.msra.mxu0 %v1217
      %1240 = vmatmul.f32.gmra.mxu0 %v970
      %v1241 = vpop.f32.mrf.mxu0
      %v1242 = vadd.f32 0.0, %v1241
      %1243 = vmatmul.f32.gmra.mxu0 %v973
      %v1244 = vpop.f32.mrf.mxu0
      %v1245 = vadd.f32 0.0, %v1244
      %1246 = vmatmul.f32.gmra.mxu0 %v976
      %v1247 = vpop.f32.mrf.mxu0
      %v1248 = vadd.f32 0.0, %v1247
      %1249 = vmatmul.f32.gmra.mxu0 %v979
      %v1250 = vpop.f32.mrf.mxu0
      %v1251 = vadd.f32 0.0, %v1250
      %1252 = vmatmul.f32.gmra.mxu0 %v982
      %v1253 = vpop.f32.mrf.mxu0
      %v1254 = vadd.f32 0.0, %v1253
      %1255 = vmatmul.f32.gmra.mxu0 %v985
      %v1256 = vpop.f32.mrf.mxu0
      %v1257 = vadd.f32 0.0, %v1256
      %1258 = vmatmul.f32.gmra.mxu0 %v988
      %v1259 = vpop.f32.mrf.mxu0
      %v1260 = vadd.f32 0.0, %v1259
      %1261 = vmatmul.f32.gmra.mxu0 %v1222
      %v1262 = vpop.f32.mrf.mxu0
      %v1263 = vadd.f32 0.0, %v1262
      %1264 = vdwg.mxu0
      %v1265 = vsel %vm784, %v1242, 0.0
      %v1266 = vsel %vm784, %v1245, 0.0
      %v1267 = vadd.f32 %v1265, %v1266
      %v1268 = vsel %vm784, %v1248, 0.0
      %v1269 = vadd.f32 %v1267, %v1268
      %v1270 = vsel %vm784, %v1251, 0.0
      %v1271 = vadd.f32 %v1269, %v1270
      %v1272 = vsel %vm784, %v1254, 0.0
      %v1273 = vadd.f32 %v1271, %v1272
      %v1274 = vsel %vm784, %v1257, 0.0
      %v1275 = vadd.f32 %v1273, %v1274
      %v1276 = vsel %vm784, %v1260, 0.0
      %v1277 = vadd.f32 %v1275, %v1276
      %v1278 = vsel %vm784, %v1263, 0.0
      %v1279 = vadd.f32 %v1277, %v1278
      %v1280 = vrot.slane %v1279, 4
      %v1281 = vadd.f32 %v1279, %v1280
      %v1282 = vrot.slane %v1281, 2
      %v1283 = vadd.f32 %v1281, %v1282
      %v1284 = vrot.slane %v1283, 1
      %v1285 = vadd.f32 %v1283, %v1284
      %v1286 = vadd.f32 %v1170, %v1285
      %v1287 = vmul.f32 %v1242, %v1242
      %v1288 = vmul.f32 %v1245, %v1245
      %v1289 = vmul.f32 %v1248, %v1248
      %v1290 = vmul.f32 %v1251, %v1251
      %v1291 = vmul.f32 %v1254, %v1254
      %v1292 = vmul.f32 %v1257, %v1257
      %v1293 = vmul.f32 %v1260, %v1260
      %v1294 = vmul.f32 %v1263, %v1263
      %v1295 = vsel %vm784, %v1287, 0.0
      %v1296 = vsel %vm784, %v1288, 0.0
      %v1297 = vadd.f32 %v1295, %v1296
      %v1298 = vsel %vm784, %v1289, 0.0
      %v1299 = vadd.f32 %v1297, %v1298
      %v1300 = vsel %vm784, %v1290, 0.0
      %v1301 = vadd.f32 %v1299, %v1300
      %v1302 = vsel %vm784, %v1291, 0.0
      %v1303 = vadd.f32 %v1301, %v1302
      %v1304 = vsel %vm784, %v1292, 0.0
      %v1305 = vadd.f32 %v1303, %v1304
      %v1306 = vsel %vm784, %v1293, 0.0
      %v1307 = vadd.f32 %v1305, %v1306
      %v1308 = vsel %vm784, %v1294, 0.0
      %v1309 = vadd.f32 %v1307, %v1308
      %v1310 = vrot.slane %v1309, 4
      %v1311 = vadd.f32 %v1309, %v1310
      %v1312 = vrot.slane %v1311, 2
      %v1313 = vadd.f32 %v1311, %v1312
      %v1314 = vrot.slane %v1313, 1
      %v1315 = vadd.f32 %v1313, %v1314
      %v1316 = vadd.f32 %v1200, %v1315
      %1325 = vrot.lane.b32.xlu0 %v1008, 4
      %v1326 = vpop.permute.xlu0 %1325
      %1327 = vrot.lane.b32.xlu0 %v1011, 4
      %v1328 = vpop.permute.xlu0 %1327
      %1329 = vrot.lane.b32.xlu0 %v1014, 4
      %v1330 = vpop.permute.xlu0 %1329
      %1331 = vrot.lane.b32.xlu0 %v1017, 4
      %v1332 = vpop.permute.xlu0 %1331
      %1333 = vrot.lane.b32.xlu0 %v1020, 4
      %v1334 = vpop.permute.xlu0 %1333
      %1335 = vrot.lane.b32.xlu0 %v1023, 4
      %v1336 = vpop.permute.xlu0 %1335
      %1337 = vrot.lane.b32.xlu0 %v1026, 4
      %v1338 = vpop.permute.xlu0 %1337
      %1339 = vrot.lane.b32.xlu0 %v1029, 4
      %v1340 = vpop.permute.xlu0 %1339
      %1357 = vrot.lane.b32.xlu0 %v1126, 8
      %v1358 = vpop.permute.xlu0 %1357
      %1359 = vrot.lane.b32.xlu0 %v1129, 8
      %v1360 = vpop.permute.xlu0 %1359
      %1361 = vrot.lane.b32.xlu0 %v1132, 8
      %v1362 = vpop.permute.xlu0 %1361
      %1363 = vrot.lane.b32.xlu0 %v1135, 8
      %v1364 = vpop.permute.xlu0 %1363
      %1365 = vrot.lane.b32.xlu0 %v1138, 8
      %v1366 = vpop.permute.xlu0 %1365
      %1367 = vrot.lane.b32.xlu0 %v1141, 8
      %v1368 = vpop.permute.xlu0 %1367
      %1369 = vrot.lane.b32.xlu0 %v1144, 8
      %v1370 = vpop.permute.xlu0 %1369
      %1371 = vrot.lane.b32.xlu0 %v1147, 8
      %v1372 = vpop.permute.xlu0 %1371
      %1389 = vrot.lane.b32.xlu0 %v1242, 12
      %v1390 = vpop.permute.xlu0 %1389
      %1391 = vrot.lane.b32.xlu0 %v1245, 12
      %v1392 = vpop.permute.xlu0 %1391
      %1393 = vrot.lane.b32.xlu0 %v1248, 12
      %v1394 = vpop.permute.xlu0 %1393
      %1395 = vrot.lane.b32.xlu0 %v1251, 12
      %v1396 = vpop.permute.xlu0 %1395
      %1397 = vrot.lane.b32.xlu0 %v1254, 12
      %v1398 = vpop.permute.xlu0 %1397
      %1399 = vrot.lane.b32.xlu0 %v1257, 12
      %v1400 = vpop.permute.xlu0 %1399
      %1401 = vrot.lane.b32.xlu0 %v1260, 12
      %v1402 = vpop.permute.xlu0 %1401
      %1403 = vrot.lane.b32.xlu0 %v1263, 12
      %v1404 = vpop.permute.xlu0 %1403
      %v1413 = vsel %vm784, %v761, %v1326
      %v1414 = vsel %vm784, %v764, %v1328
      %v1415 = vsel %vm784, %v767, %v1330
      %v1416 = vsel %vm784, %v770, %v1332
      %v1417 = vsel %vm784, %v773, %v1334
      %v1418 = vsel %vm784, %v776, %v1336
      %v1419 = vsel %vm784, %v779, %v1338
      %v1420 = vsel %vm784, %v782, %v1340
      %v1421 = vsel %vm535, %v1413, %v1358
      %v1422 = vsel %vm535, %v1414, %v1360
      %v1423 = vsel %vm535, %v1415, %v1362
      %v1424 = vsel %vm535, %v1416, %v1364
      %v1425 = vsel %vm535, %v1417, %v1366
      %v1426 = vsel %vm535, %v1418, %v1368
      %v1427 = vsel %vm535, %v1419, %v1370
      %v1428 = vsel %vm535, %v1420, %v1372
      %vm1429 = vcmask 97280
      %v1430 = vsel %vm1429, %v1421, %v1390
      %v1431 = vsel %vm1429, %v1422, %v1392
      %v1432 = vsel %vm1429, %v1423, %v1394
      %v1433 = vsel %vm1429, %v1424, %v1396
      %v1434 = vsel %vm1429, %v1425, %v1398
      %v1435 = vsel %vm1429, %v1426, %v1400
      %v1436 = vsel %vm1429, %v1427, %v1402
      %v1437 = vsel %vm1429, %v1428, %v1404
      %1438 = vst.msk [vmem:[%s204] sm:$0xff] %vm425, %v1430
      %1439 = vst.msk [vmem:[%s204 + $0x8] sm:$0xff] %vm425, %v1431
      %1440 = vst.msk [vmem:[%s204 + $0x10] sm:$0xff] %vm425, %v1432
      %1441 = vst.msk [vmem:[%s204 + $0x18] sm:$0xff] %vm425, %v1433
      %1442 = vst.msk [vmem:[%s204 + $0x20] sm:$0xff] %vm425, %v1434
      %1443 = vst.msk [vmem:[%s204 + $0x28] sm:$0xff] %vm425, %v1435
      %1444 = vst.msk [vmem:[%s204 + $0x30] sm:$0xff] %vm425, %v1436
      %1445 = vst.msk [vmem:[%s204 + $0x38] sm:$0xff] %vm425, %v1437
      %vm1446 = vcmask 1040384
      %v1447 = vsel %vm1446, %v1286, %v1316
      %vm1448 = vcmask 25600
      %1449 = vst.msk [vmem:[%s208] sm:$0x3] %vm1448, %v1447
      %p1450 = scmp.lt.s32.totalorder %s16, 1
      %s1451 = scalar_select %p1450, %s16, 1
      %s1452 = smul.addr %s1451, 8
      %s1453 = smul.addr %s1452, 8
      %s1454 = scalar_lea.vmem %s3, %s1453
      %p1455 = scmp.lt.s32.totalorder %s16, 1
      %s1456 = scalar_select %p1455, %s16, 1
      %s1457 = smul.addr %s1456, 2
      %s1458 = scalar_lea.vmem %s4, %s1457
      // Predicated region
      $region37: #{unet_innermost_forward.1} parent=31 // pred_check
        %p1459 = pneg %p102
      $region38: #{unet_innermost_forward.1} parent=31 // pred_check_branch
        %1461 = sbr.rel (%p1459) target = $region40
      $region39: #{unet_innermost_forward.1} parent=31 // pred_region
        _
      $region40: #{unet_innermost_forward.1} parent=31 // pred_fallthru
        _
      // Predicated region
      $region41: #{unet_innermost_forward.1} parent=31 // pred_check
        %p1462 = pneg %p128
      $region42: #{unet_innermost_forward.1} parent=31 // pred_check_branch
        %1464 = sbr.rel (%p1462) target = $region44
      $region43: #{unet_innermost_forward.1} parent=31 // pred_region
        _
      $region44: #{unet_innermost_forward.1} parent=31 // pred_fallthru
        _
    $region32: #{unet_innermost_forward.1} parent=5 // pred_fallthru
      _
    %p1465 = scmp.le.s32.totalorder 2, %s11
    // Predicated region
    $region45: #{unet_innermost_forward.1} parent=5 // pred_check
      %p1466 = pneg %p1465
    $region46: #{unet_innermost_forward.1} parent=5 // pred_check_branch
      %1468 = sbr.rel (%p1466) target = $region48
    $region47: #{unet_innermost_forward.1} parent=5 // pred_region
      %s1469 = ssub.s32 %s11, 2
      // Predicated region
      $region49: #{unet_innermost_forward.1} parent=47 // pred_check
        %p1470 = pneg %p108
      $region50: #{unet_innermost_forward.1} parent=47 // pred_check_branch
        %1472 = sbr.rel (%p1470) target = $region52
      $region51: #{unet_innermost_forward.1} parent=47 // pred_region
        %p1473 = scmp.lt.s32.totalorder %s17, 1
        %s1474 = scalar_select %p1473, %s17, 1
        %s1475 = smul.addr %s1474, 8
        %s1476 = smul.addr %s1475, 8
        %s1477 = scalar_lea.vmem %s3, %s1476
      $region52: #{unet_innermost_forward.1} parent=47 // pred_fallthru
        _
      // Predicated region
      $region53: #{unet_innermost_forward.1} parent=47 // pred_check
        %p1478 = pneg %p134
      $region54: #{unet_innermost_forward.1} parent=47 // pred_check_branch
        %1480 = sbr.rel (%p1478) target = $region56
      $region55: #{unet_innermost_forward.1} parent=47 // pred_region
        %p1481 = scmp.lt.s32.totalorder %s17, 1
        %s1482 = scalar_select %p1481, %s17, 1
        %s1483 = smul.addr %s1482, 2
        %s1484 = scalar_lea.vmem %s4, %s1483
      $region56: #{unet_innermost_forward.1} parent=47 // pred_fallthru
        _
    $region48: #{unet_innermost_forward.1} parent=5 // pred_fallthru
      _
  $region6: #{unet_innermost_forward.1} parent=0 // loop_footer
    %s15 = sadd.s32 1, %s11
  $region7: #{unet_innermost_forward.1} parent=0 // loop_footer_branch
    %10 = sbr.rel target = $region3
  $region8: #{unet_innermost_forward.1} parent=0 // loop_exit
    _

</llo_original>
